<compile_context>
chip_gen: v5e
topology: v5e:2x2
jax: 0.10.0
libtpu: 0.0.40
codegen_flags: <defaults>
</compile_context>

<pallas_src>
import functools
import math

import numpy as np
import jax
import jax.numpy as jnp
from jax import lax
from jax.experimental import pallas as pl
from jax.experimental.pallas import tpu as pltpu

# ---------------- constants (MFCCBlock defaults) ----------------
SR = 16000
WINDOW_MS = 40
STRIDE_MS = 20
N_FFT = SR * WINDOW_MS // 1000          # 640
HOP = SR * STRIDE_MS // 1000            # 320
N_MELS = 128                            # conveniently == lane width
N_MFCC = 10
N_FREQ = N_FFT // 2 + 1                 # 321 (one-sided spectrum)
N_FREQ_PAD = 384                        # padded to a lane multiple (zeros)
TOP_DB = 80.0
AMIN = 1e-10
BN_EPS = 1e-5

TM_MAX = 512        # frame rows per MFCC grid step (multiple of 256; 1024 also fits)
TR_MAX = 2048       # rows per BatchNorm-apply grid step
B_TILE_MAX = 8      # max samples per clamp+DCT grid step (static in-kernel unroll)
ROW_BUDGET = 2048   # cap on b_tile * T rows held in VMEM per clamp+DCT step


# ---------------- parameter construction (deterministic) ----------------
def _hz_to_mel_htk(f):
    return 2595.0 * np.log10(1.0 + np.asarray(f, np.float64) / 700.0)


def _mel_to_hz_htk(m):
    return 700.0 * (10.0 ** (np.asarray(m, np.float64) / 2595.0) - 1.0)


def _mel_filterbank(n_freqs, n_mels, sr):
    # matches torchaudio.functional.melscale_fbanks(mel_scale='htk', norm=None)
    f_min, f_max = 0.0, sr / 2.0
    all_freqs = np.linspace(0.0, sr / 2.0, n_freqs)
    m_pts = np.linspace(_hz_to_mel_htk(f_min), _hz_to_mel_htk(f_max), n_mels + 2)
    f_pts = _mel_to_hz_htk(m_pts)
    f_diff = f_pts[1:] - f_pts[:-1]                       # (n_mels + 1,)
    slopes = f_pts[None, :] - all_freqs[:, None]          # (n_freqs, n_mels + 2)
    down = -slopes[:, :-2] / f_diff[:-1]
    up = slopes[:, 2:] / f_diff[1:]
    fb = np.maximum(0.0, np.minimum(down, up))            # (n_freqs, n_mels)
    return fb.astype(np.float64)


def _dct_matrix(n_mfcc, n_mels):
    # matches torchaudio.functional.create_dct(norm='ortho')
    n = np.arange(n_mels, dtype=np.float64)
    k = np.arange(n_mfcc, dtype=np.float64)[:, None]
    dct = np.cos(np.pi / n_mels * (n + 0.5) * k)          # (n_mfcc, n_mels)
    dct[0] *= 1.0 / math.sqrt(2.0)
    dct *= math.sqrt(2.0 / n_mels)
    return np.ascontiguousarray(dct.T)                     # (n_mels, n_mfcc)


def _hann_window(n_fft):
    # torch.hann_window(n_fft, periodic=True)
    n = np.arange(n_fft, dtype=np.float64)
    return 0.5 - 0.5 * np.cos(2.0 * np.pi * n / n_fft)


def _windowed_dft_matrix(n_fft, n_freq, n_freq_pad):
    # Hann window folded in; cos and sin bases concatenated -> ONE MXU weight matrix.
    win = _hann_window(n_fft)[:, None]                     # (n_fft, 1)
    n = np.arange(n_fft, dtype=np.float64)[:, None]
    k = np.arange(n_freq, dtype=np.float64)[None, :]
    ang = 2.0 * np.pi * n * k / n_fft
    cossin = np.zeros((n_fft, 2 * n_freq_pad), np.float64)
    cossin[:, :n_freq] = win * np.cos(ang)                 # real part columns
    cossin[:, n_freq_pad:n_freq_pad + n_freq] = win * np.sin(ang)  # imag part columns
    return cossin                                          # (640, 768)


def make_params():
    cossin = _windowed_dft_matrix(N_FFT, N_FREQ, N_FREQ_PAD)
    mel = np.pad(_mel_filterbank(N_FREQ, N_MELS, SR),
                 ((0, N_FREQ_PAD - N_FREQ), (0, 0)))       # (384, 128) zero-padded rows
    dct = np.pad(_dct_matrix(N_MFCC, N_MELS),
                 ((0, 0), (0, N_MELS - N_MFCC)))           # (128, 128) zero-padded cols
    return dict(
        # big MXU operand in bf16 (f32 accumulation inside the kernel)
        cossin=jnp.asarray(cossin, dtype=jnp.bfloat16),    # (640, 768)
        # small / precision-sensitive weights stay f32
        mel_fb=jnp.asarray(mel, dtype=jnp.float32),        # (384, 128)
        dct=jnp.asarray(dct, dtype=jnp.float32),           # (128, 128)
        gamma=jnp.ones((1, N_MELS), jnp.float32),          # BatchNorm2d default init
        beta=jnp.zeros((1, N_MELS), jnp.float32),
    )


# ---------------- Pallas kernels ----------------
def mfcc_db_kernel(frames_ref, cossin_ref, mel_ref, db_ref):
    # frames_ref: (TM, N_FFT) bf16 frames (Hann window folded into cossin)
    fr = frames_ref[...]
    reim = jnp.dot(fr, cossin_ref[...], preferred_element_type=jnp.float32)  # (TM, 768)
    re = reim[:, :N_FREQ_PAD]                              # lane-aligned static slices
    im = reim[:, N_FREQ_PAD:]
    power = re * re + im * im                              # f32 |STFT|^2, (TM, 384)
    mel = jnp.dot(power, mel_ref[...], preferred_element_type=jnp.float32)   # f32 matmul
    db_ref[...] = 10.0 * jnp.log10(jnp.maximum(mel, AMIN))  # f32 dB


def clamp_dct_stats_kernel(db_ref, dct_ref, out_ref, stats_ref, *, b_tile):
    # db_ref: (b_tile, T, 128) -> per-sample top_db clamp, DCT, and fused BN
    # per-channel sum / sum-of-squares accumulation across the grid.
    @pl.when(pl.program_id(0) == 0)
    def _():
        stats_ref[...] = jnp.zeros_like(stats_ref)

    dct = dct_ref[...]
    ssum = jnp.zeros((1, N_MELS), jnp.float32)
    ssq = jnp.zeros((1, N_MELS), jnp.float32)
    for j in range(b_tile):                                # static unroll (b_tile <= 8)
        db = db_ref[j]                                     # (T, 128)
        db = jnp.maximum(db, jnp.max(db) - TOP_DB)         # max over full (T, n_mels)
        mfcc = jnp.dot(db, dct, preferred_element_type=jnp.float32)  # (T, 128)
        out_ref[j] = mfcc
        ssum = ssum + jnp.sum(mfcc, axis=0, keepdims=True)
        ssq = ssq + jnp.sum(mfcc * mfcc, axis=0, keepdims=True)
    stats_ref[0:1, :] += ssum
    stats_ref[1:2, :] += ssq


def bn_apply_kernel(x_ref, scale_ref, shift_ref, out_ref):
    # x_ref: (tr, 128) row tile of the flattened MFCC tensor; scale/shift: (1, 128)
    out_ref[...] = x_ref[...] * scale_ref[...] + shift_ref[...]


# ---------------- wrapper ----------------
def _round_up(x, m):
    return ((x + m - 1) // m) * m


def mfcc_block_forward(x, params):
    """x: (B, 1, S) float32 waveform -> (B, 10, T, 1) float32."""
    B = x.shape[0]
    sig = x[:, 0, :]
    S = sig.shape[-1]
    assert S >= N_FFT, "signal shorter than one analysis window"
    T = 1 + (S - N_FFT) // HOP                 # center=False framing

    # Frame without a per-frame Python loop: n_fft == 2*hop, so each frame is a
    # pair of adjacent non-overlapping hops.
    assert N_FFT == 2 * HOP, "hop-pair framing requires n_fft == 2*hop"
    hops = sig[:, :(T + 1) * HOP].reshape(B, T + 1, HOP)
    frames = jnp.concatenate([hops[:, :T, :], hops[:, 1:, :]], axis=-1)   # (B,T,N_FFT)
    frames_flat = frames.reshape(B * T, N_FFT).astype(jnp.bfloat16)
    # TODO(synk): frames are still materialized once in HBM (~2x signal bytes); an
    # in-kernel pl.ds framing pass over the hop-reshaped signal would remove that.

    # ---- kernel 1: windowed real-DFT -> power -> mel -> dB, tiled over M=B*T ----
    M = B * T
    if M <= TM_MAX:
        tm, m_pad = M, M                       # single tile == full dim (always legal)
    else:
        tm = TM_MAX                            # 512: multiple of 8 / 256
        m_pad = _round_up(M, tm)
    if m_pad != M:
        frames_flat = jnp.pad(frames_flat, ((0, m_pad - M), (0, 0)))

    db_flat = pl.pallas_call(
        mfcc_db_kernel,
        out_shape=jax.ShapeDtypeStruct((m_pad, N_MELS), jnp.float32),
        grid_spec=pltpu.PrefetchScalarGridSpec(
            num_scalar_prefetch=0,
            grid=(m_pad // tm,),
            in_specs=[
                pl.BlockSpec((tm, N_FFT), lambda i: (i, 0)),
                pl.BlockSpec((N_FFT, 2 * N_FREQ_PAD), lambda i: (0, 0)),
                pl.BlockSpec((N_FREQ_PAD, N_MELS), lambda i: (0, 0)),
            ],
            out_specs=pl.BlockSpec((tm, N_MELS), lambda i: (i, 0)),
        ),
        compiler_params=pltpu.CompilerParams(
            dimension_semantics=("parallel",),
            vmem_limit_bytes=32 * 1024 * 1024),
    )(frames_flat, params["cossin"], params["mel_fb"])

    db = db_flat[:M].reshape(B, T, N_MELS)

    # ---- kernel 2: per-sample top_db clamp + DCT + fused BN sum/sumsq stats ----
    b_tile = max(1, min(B, B_TILE_MAX, max(1, ROW_BUDGET // T)))
    b_pad = _round_up(B, b_tile)
    if b_pad != B:
        db = jnp.pad(db, ((0, b_pad - B), (0, 0), (0, 0)))   # zero samples: no-ops
    # TODO(synk): a single sample whose (T,128) dB spectrogram exceeds VMEM (hours of
    # audio) would need a separate per-sample-max pass before the clamp.

    mfcc128, stats = pl.pallas_call(
        functools.partial(clamp_dct_stats_kernel, b_tile=b_tile),
        out_shape=(jax.ShapeDtypeStruct((b_pad, T, N_MELS), jnp.float32),
                   jax.ShapeDtypeStruct((2, N_MELS), jnp.float32)),
        grid_spec=pltpu.PrefetchScalarGridSpec(
            num_scalar_prefetch=0,
            grid=(b_pad // b_tile,),
            in_specs=[
                pl.BlockSpec((b_tile, T, N_MELS), lambda b: (b, 0, 0)),
                pl.BlockSpec((N_MELS, N_MELS), lambda b: (0, 0)),
            ],
            out_specs=[
                pl.BlockSpec((b_tile, T, N_MELS), lambda b: (b, 0, 0)),
                pl.BlockSpec((2, N_MELS), lambda b: (0, 0)),
            ],
        ),
        compiler_params=pltpu.CompilerParams(
            dimension_semantics=("arbitrary",),   # stats block is a resident accumulator
            vmem_limit_bytes=32 * 1024 * 1024),
    )(db, params["dct"])

    # ---- BatchNorm2d (train mode, biased variance) scale/shift from the stats ----
    # Padded samples contributed exact zeros to the sums, so divide by the real count.
    count = float(B * T)
    mean = stats[0:1, :] / count                               # (1, 128)
    var = jnp.maximum(stats[1:2, :] / count - mean * mean, 0.0)
    scale = params["gamma"] * lax.rsqrt(var + BN_EPS)
    shift = params["beta"] - mean * scale
    # TODO(synk): nn.BatchNorm2d running_mean/running_var updates (a training side
    # effect) are not reproduced; only the forward normalization is.

    # ---- kernel 3: gridded BN normalize over row tiles of flattened (B*T, 128) ----
    rows = mfcc128[:B].reshape(M, N_MELS)
    if M <= TR_MAX:
        tr, m2_pad = M, M
    else:
        tr = TR_MAX
        m2_pad = _round_up(M, tr)
    if m2_pad != M:
        rows = jnp.pad(rows, ((0, m2_pad - M), (0, 0)))

    bn_rows = pl.pallas_call(
        bn_apply_kernel,
        out_shape=jax.ShapeDtypeStruct((m2_pad, N_MELS), jnp.float32),
        grid_spec=pltpu.PrefetchScalarGridSpec(
            num_scalar_prefetch=0,
            grid=(m2_pad // tr,),
            in_specs=[
                pl.BlockSpec((tr, N_MELS), lambda i: (i, 0)),
                pl.BlockSpec((1, N_MELS), lambda i: (0, 0)),
                pl.BlockSpec((1, N_MELS), lambda i: (0, 0)),
            ],
            out_specs=pl.BlockSpec((tr, N_MELS), lambda i: (i, 0)),
        ),
        compiler_params=pltpu.CompilerParams(
            dimension_semantics=("parallel",),
            vmem_limit_bytes=32 * 1024 * 1024),
    )(rows, scale, shift)

    out = bn_rows[:M].reshape(B, T, N_MELS)[:, :, :N_MFCC]
    # (B, T, 10) -> (B, 10, T, 1): matches MFCC -> transpose(2,3) -> permute(0,3,2,1)
    # TODO(synk): the BN pass writes all 128 padded channels then slices to 10; a
    # lane-transposed (B,128,T) output layout would cut that HBM write (low priority).
    return jnp.transpose(out, (0, 2, 1))[..., None]


if __name__ == "__main__":
    key = jax.random.PRNGKey(0)
    B, S = 2, 3200                             # 0.2 s of 16 kHz audio -> T = 9 frames
    x = jax.random.normal(key, (B, 1, S), dtype=jnp.float32)

    params = make_params()
    out = mfcc_block_forward(x, params)
    out = jax.block_until_ready(out)

    expected_T = 1 + (S - N_FFT) // HOP
    assert out.shape == (B, N_MFCC, expected_T, 1), out.shape
    assert out.dtype == jnp.float32
    assert bool(jnp.all(jnp.isfinite(out)))
    print("KERNEL_OK")
</pallas_src>

<mosaic_0001>
module attributes {stable_mosaic.version = 11 : i64} {
  func.func @mfcc_db_kernel(%arg0: i32, %arg1: memref<18x640xbf16, #tpu.memory_space<vmem>>, %arg2: memref<640x768xbf16, #tpu.memory_space<vmem>>, %arg3: memref<384x128xf32, #tpu.memory_space<vmem>>, %arg4: memref<18x128xf32, #tpu.memory_space<vmem>>) attributes {dimension_semantics = [#tpu.dimension_semantics<parallel>], iteration_bounds = array<i64: 1>, scalar_prefetch = 0 : i64, scratch_operands = 0 : i64, tpu.core_type = #tpu.core_type<tc>, window_params = [{transform_indices = @transform_0, window_bounds = array<i64: 18, 640>}, {pipeline_mode = #tpu.pipeline_mode<synchronous>, transform_indices = @transform_1, window_bounds = array<i64: 640, 768>}, {pipeline_mode = #tpu.pipeline_mode<synchronous>, transform_indices = @transform_2, window_bounds = array<i64: 384, 128>}, {transform_indices = @transform_3, window_bounds = array<i64: 18, 128>}]} {
    %c0 = arith.constant 0 : index
    %c0_0 = arith.constant 0 : index
    %0 = vector.load %arg1[%c0, %c0_0] : memref<18x640xbf16, #tpu.memory_space<vmem>>, vector<18x640xbf16>
    %c0_1 = arith.constant 0 : index
    %c0_2 = arith.constant 0 : index
    %1 = vector.load %arg2[%c0_1, %c0_2] : memref<640x768xbf16, #tpu.memory_space<vmem>>, vector<640x768xbf16>
    %cst = arith.constant dense<0.000000e+00> : vector<18x768xf32>
    %2 = tpu.matmul %0, %1, %cst {dimension_numbers = #tpu.dot_dimension_numbers<[1], [0], [0], [1], [0, 0, 1, 1], [], []>} : vector<18x640xbf16>, vector<640x768xbf16>, vector<18x768xf32> -> vector<18x768xf32>
    %3 = vector.extract_strided_slice %2 {offsets = [0, 0], sizes = [18, 384], strides = [1, 1]} : vector<18x768xf32> to vector<18x384xf32>
    %4 = vector.extract_strided_slice %2 {offsets = [0, 384], sizes = [18, 384], strides = [1, 1]} : vector<18x768xf32> to vector<18x384xf32>
    %5 = arith.mulf %3, %3 : vector<18x384xf32>
    %6 = arith.mulf %4, %4 : vector<18x384xf32>
    %7 = arith.addf %5, %6 : vector<18x384xf32>
    %c0_3 = arith.constant 0 : index
    %c0_4 = arith.constant 0 : index
    %8 = vector.load %arg3[%c0_3, %c0_4] : memref<384x128xf32, #tpu.memory_space<vmem>>, vector<384x128xf32>
    %cst_5 = arith.constant dense<0.000000e+00> : vector<18x128xf32>
    %9 = tpu.matmul %7, %8, %cst_5 {dimension_numbers = #tpu.dot_dimension_numbers<[1], [0], [0], [1], [0, 0, 1, 1], [], []>} : vector<18x384xf32>, vector<384x128xf32>, vector<18x128xf32> -> vector<18x128xf32>
    %cst_6 = arith.constant 1.000000e-10 : f32
    %10 = vector.broadcast %cst_6 : f32 to vector<18x128xf32>
    %11 = arith.maximumf %9, %10 : vector<18x128xf32>
    %12 = math.log %11 : vector<18x128xf32>
    %cst_7 = arith.constant 0.434294492 : f32
    %13 = vector.broadcast %cst_7 : f32 to vector<18x128xf32>
    %14 = arith.mulf %12, %13 : vector<18x128xf32>
    %cst_8 = arith.constant 1.000000e+01 : f32
    %15 = vector.broadcast %cst_8 : f32 to vector<18x128xf32>
    %16 = arith.mulf %15, %14 : vector<18x128xf32>
    %c0_9 = arith.constant 0 : index
    %c0_10 = arith.constant 0 : index
    %17 = vector.load %arg4[%c0_9, %c0_10] : memref<18x128xf32, #tpu.memory_space<vmem>>, vector<18x128xf32>
    tpu.vector_store %arg4[%c0_9, %c0_10], %16 {strides = array<i32>} : memref<18x128xf32, #tpu.memory_space<vmem>>, vector<18x128xf32>,
    return
  }
  func.func @transform_0(%arg0: i32) -> (i32, i32) {
    %c0_i32 = arith.constant 0 : i32
    %c0_i32_0 = arith.constant 0 : i32
    return %arg0, %c0_i32 : i32, i32
  }
  func.func @transform_1(%arg0: i32) -> (i32, i32) {
    %c0_i32 = arith.constant 0 : i32
    %c0_i32_0 = arith.constant 0 : i32
    %c0_i32_1 = arith.constant 0 : i32
    return %c0_i32, %c0_i32_0 : i32, i32
  }
  func.func @transform_2(%arg0: i32) -> (i32, i32) {
    %c0_i32 = arith.constant 0 : i32
    %c0_i32_0 = arith.constant 0 : i32
    %c0_i32_1 = arith.constant 0 : i32
    return %c0_i32, %c0_i32_0 : i32, i32
  }
  func.func @transform_3(%arg0: i32) -> (i32, i32) {
    %c0_i32 = arith.constant 0 : i32
    %c0_i32_0 = arith.constant 0 : i32
    return %arg0, %c0_i32 : i32, i32
  }
}

</mosaic_0001>

<llo_original>
// kernel: tpu_custom_call.1
$region0: #{tpu_custom_call.1}
  #allocation0 [shape = 'u32[]', space=smem, size = 0x4, offset = 0x4, fixed_abs, tag = 'smem constant byte address 0x4 - core index']
  #allocation1 [shape = 'u32[72,128]{1,0:T(1,128)}', space=vmem, size = 0x9000, scoped, tag = 'internal scratch']
  %s0 = inlined_call_operand.hbm [shape: bf16[18,640], index: 0, kind: input, shape index: {}]
  %s1 = inlined_call_operand.hbm [shape: bf16[640,768], index: 1, kind: input, shape index: {}]
  %s2 = inlined_call_operand.hbm [shape: f32[384,128], index: 2, kind: input, shape index: {}]
  %s3 = inlined_call_operand.hbm [shape: f32[18,128], index: 3, kind: output, shape index: {}]
  %s4 = sld [smem:[#allocation0]]
  $region34: #{tpu_custom_call.1} parent=0
    _
  %s6 = ssub.s32 1, %s4
  %s7 = scalar_select 0, %s6, %s4
  $region1: #{tpu_custom_call.1} parent=0
    #allocation2 [shape = 'u8[30720]{0}', space=vmem, size = 0x7800, scoped, tag = 'input window, operand 0, single buffered']
    #allocation3 [shape = 's32[1]{0}', space=sflag, size = 0x4, scoped, tag = 'scoped memory for tpu_custom_call.1']
    #allocation4 [shape = 's32[1]{0}', space=sflag, size = 0x4, scoped, tag = 'scoped memory for tpu_custom_call.1']
    #allocation5 [shape = 'u8[983040]{0}', space=vmem, size = 0xf0000, scoped, tag = 'input window, operand 1, single buffered']
    #allocation6 [shape = 's32[1]{0}', space=sflag, size = 0x4, scoped, tag = 'scoped memory for tpu_custom_call.1']
    #allocation7 [shape = 'u8[196608]{0}', space=vmem, size = 0x30000, scoped, tag = 'input window, operand 2, single buffered']
    #allocation8 [shape = 'u8[12288]{0}', space=vmem, size = 0x3000, scoped, tag = 'output window, operand 0, single buffered']
    %8 = vsyncpa [#allocation3], 0
    %9 = vsyncpa [#allocation6], 0
    %10 = vsyncpa [#allocation4], 0
    // Predicated region
    $region2: #{tpu_custom_call.1} parent=1 // pred_check
      _
    $region3: #{tpu_custom_call.1} parent=1 // pred_check_branch
      %12 = sbr.rel (0) target = $region5
    $region4: #{tpu_custom_call.1} parent=1 // pred_region
      %14 = vsyncadd [#allocation3], 0
      %s15 = sshll.u32 %s0, 4
      %s16 = int_to_ptr.hbm [resolvable:$true] %s15
      %s17 = sshll.u32 [#allocation2], 4
      %s18 = int_to_ptr.vmem [resolvable:$true] %s17
      %23 = dma.hbm_to_vmem [thread:$0]  %s16, 960, %s18, [#allocation3], 320, 320, 20
    $region5: #{tpu_custom_call.1} parent=1 // pred_fallthru
      _
    // Predicated region
    $region6: #{tpu_custom_call.1} parent=1 // pred_check
      _
    $region7: #{tpu_custom_call.1} parent=1 // pred_check_branch
      %25 = sbr.rel (0) target = $region9
    $region8: #{tpu_custom_call.1} parent=1 // pred_region
      %27 = vsyncadd [#allocation6], 0
      %s28 = sshll.u32 %s1, 4
      %s29 = int_to_ptr.hbm [resolvable:$true] %s28
      %s30 = sshll.u32 [#allocation5], 4
      %s31 = int_to_ptr.vmem [resolvable:$true] %s30
      %36 = dma.hbm_to_vmem [thread:$0]  %s29, 30720, %s31, [#allocation6], 384, 384, 24
    $region9: #{tpu_custom_call.1} parent=1 // pred_fallthru
      _
    // Predicated region
    $region10: #{tpu_custom_call.1} parent=1 // pred_check
      _
    $region11: #{tpu_custom_call.1} parent=1 // pred_check_branch
      %38 = sbr.rel (0) target = $region13
    $region12: #{tpu_custom_call.1} parent=1 // pred_region
      %40 = vsyncadd [#allocation6], 0
      %s41 = sshll.u32 %s2, 4
      %s42 = int_to_ptr.hbm [resolvable:$true] %s41
      %s43 = sshll.u32 [#allocation7], 4
      %s44 = int_to_ptr.vmem [resolvable:$true] %s43
      %49 = dma.hbm_to_vmem [thread:$0]  %s42, 6144, %s44, [#allocation6], 128, 128, 8
    $region13: #{tpu_custom_call.1} parent=1 // pred_fallthru
      _
    // Predicated region
    $region14: #{tpu_custom_call.1} parent=1 // pred_check
      _
    $region15: #{tpu_custom_call.1} parent=1 // pred_check_branch
      %51 = sbr.rel (0) target = $region17
    $region16: #{tpu_custom_call.1} parent=1 // pred_region
      %53 = dma.done [#allocation3], 960
    $region17: #{tpu_custom_call.1} parent=1 // pred_fallthru
      _
    // Predicated region
    $region18: #{tpu_custom_call.1} parent=1 // pred_check
      _
    $region19: #{tpu_custom_call.1} parent=1 // pred_check_branch
      %55 = sbr.rel (0) target = $region21
    $region20: #{tpu_custom_call.1} parent=1 // pred_region
      %57 = dma.done [#allocation6], 30720
    $region21: #{tpu_custom_call.1} parent=1 // pred_fallthru
      _
    // Predicated region
    $region22: #{tpu_custom_call.1} parent=1 // pred_check
      _
    $region23: #{tpu_custom_call.1} parent=1 // pred_check_branch
      %59 = sbr.rel (0) target = $region25
    $region24: #{tpu_custom_call.1} parent=1 // pred_region
      %61 = dma.done [#allocation6], 6144
    $region25: #{tpu_custom_call.1} parent=1 // pred_fallthru
      _
    %v62 = vld [vmem:[#allocation2] sm:$0xff]
    %v63 = vld [vmem:[#allocation2 + $0x8] sm:$0xff]
    %v64 = vld [vmem:[#allocation2 + $0x10] sm:$0xf]
    %v65 = vld [vmem:[#allocation2 + $0x14] sm:$0xff]
    %v66 = vld [vmem:[#allocation2 + $0x1c] sm:$0xff]
    %v67 = vld [vmem:[#allocation2 + $0x24] sm:$0xf]
    %v68 = vld [vmem:[#allocation2 + $0x28] sm:$0x11]
    %v69 = vld [vmem:[#allocation2 + $0x30] sm:$0x11]
    %v70 = vld [vmem:[#allocation2 + $0x38] sm:$0x1]
    %v71 = vld [vmem:[#allocation5] sm:$0xff]
    %v72 = vld [vmem:[#allocation5 + $0x8] sm:$0xff]
    %v73 = vld [vmem:[#allocation5 + $0x10] sm:$0xff]
    %v74 = vld [vmem:[#allocation5 + $0x18] sm:$0xff]
    %v75 = vld [vmem:[#allocation5 + $0x20] sm:$0xff]
    %v76 = vld [vmem:[#allocation5 + $0x28] sm:$0xff]
    %v77 = vld [vmem:[#allocation5 + $0x30] sm:$0xff]
    %v78 = vld [vmem:[#allocation5 + $0x38] sm:$0xff]
    %v79 = vld [vmem:[#allocation5 + $0x40] sm:$0xff]
    %v80 = vld [vmem:[#allocation5 + $0x48] sm:$0xff]
    %v81 = vld [vmem:[#allocation5 + $0x50] sm:$0xff]
    %v82 = vld [vmem:[#allocation5 + $0x58] sm:$0xff]
    %v83 = vld [vmem:[#allocation5 + $0x60] sm:$0xff]
    %v84 = vld [vmem:[#allocation5 + $0x68] sm:$0xff]
    %v85 = vld [vmem:[#allocation5 + $0x70] sm:$0xff]
    %v86 = vld [vmem:[#allocation5 + $0x78] sm:$0xff]
    %v87 = vld [vmem:[#allocation5 + $0x80] sm:$0xff]
    %v88 = vld [vmem:[#allocation5 + $0x88] sm:$0xff]
    %v89 = vld [vmem:[#allocation5 + $0x90] sm:$0xff]
    %v90 = vld [vmem:[#allocation5 + $0x98] sm:$0xff]
    %v91 = vld [vmem:[#allocation5 + $0xa0] sm:$0xff]
    %v92 = vld [vmem:[#allocation5 + $0xa8] sm:$0xff]
    %v93 = vld [vmem:[#allocation5 + $0xb0] sm:$0xff]
    %v94 = vld [vmem:[#allocation5 + $0xb8] sm:$0xff]
    %v95 = vld [vmem:[#allocation5 + $0xc0] sm:$0xff]
    %v96 = vld [vmem:[#allocation5 + $0xc8] sm:$0xff]
    %v97 = vld [vmem:[#allocation5 + $0xd0] sm:$0xff]
    %v98 = vld [vmem:[#allocation5 + $0xd8] sm:$0xff]
    %v99 = vld [vmem:[#allocation5 + $0xe0] sm:$0xff]
    %v100 = vld [vmem:[#allocation5 + $0xe8] sm:$0xff]
    %v101 = vld [vmem:[#allocation5 + $0xf0] sm:$0xff]
    %v102 = vld [vmem:[#allocation5 + $0xf8] sm:$0xff]
    %v103 = vld [vmem:[#allocation5 + $0x100] sm:$0xff]
    %v104 = vld [vmem:[#allocation5 + $0x108] sm:$0xff]
    %v105 = vld [vmem:[#allocation5 + $0x110] sm:$0xff]
    %v106 = vld [vmem:[#allocation5 + $0x118] sm:$0xff]
    %v107 = vld [vmem:[#allocation5 + $0x120] sm:$0xff]
    %v108 = vld [vmem:[#allocation5 + $0x128] sm:$0xff]
    %v109 = vld [vmem:[#allocation5 + $0x130] sm:$0xff]
    %v110 = vld [vmem:[#allocation5 + $0x138] sm:$0xff]
    %v111 = vld [vmem:[#allocation5 + $0x140] sm:$0xff]
    %v112 = vld [vmem:[#allocation5 + $0x148] sm:$0xff]
    %v113 = vld [vmem:[#allocation5 + $0x150] sm:$0xff]
    %v114 = vld [vmem:[#allocation5 + $0x158] sm:$0xff]
    %v115 = vld [vmem:[#allocation5 + $0x160] sm:$0xff]
    %v116 = vld [vmem:[#allocation5 + $0x168] sm:$0xff]
    %v117 = vld [vmem:[#allocation5 + $0x170] sm:$0xff]
    %v118 = vld [vmem:[#allocation5 + $0x178] sm:$0xff]
    %v119 = vld [vmem:[#allocation5 + $0x180] sm:$0xff]
    %v120 = vld [vmem:[#allocation5 + $0x188] sm:$0xff]
    %v121 = vld [vmem:[#allocation5 + $0x190] sm:$0xff]
    %v122 = vld [vmem:[#allocation5 + $0x198] sm:$0xff]
    %v123 = vld [vmem:[#allocation5 + $0x1a0] sm:$0xff]
    %v124 = vld [vmem:[#allocation5 + $0x1a8] sm:$0xff]
    %v125 = vld [vmem:[#allocation5 + $0x1b0] sm:$0xff]
    %v126 = vld [vmem:[#allocation5 + $0x1b8] sm:$0xff]
    %v127 = vld [vmem:[#allocation5 + $0x1c0] sm:$0xff]
    %v128 = vld [vmem:[#allocation5 + $0x1c8] sm:$0xff]
    %v129 = vld [vmem:[#allocation5 + $0x1d0] sm:$0xff]
    %v130 = vld [vmem:[#allocation5 + $0x1d8] sm:$0xff]
    %v131 = vld [vmem:[#allocation5 + $0x1e0] sm:$0xff]
    %v132 = vld [vmem:[#allocation5 + $0x1e8] sm:$0xff]
    %v133 = vld [vmem:[#allocation5 + $0x1f0] sm:$0xff]
    %v134 = vld [vmem:[#allocation5 + $0x1f8] sm:$0xff]
    %v135 = vld [vmem:[#allocation5 + $0x200] sm:$0xff]
    %v136 = vld [vmem:[#allocation5 + $0x208] sm:$0xff]
    %v137 = vld [vmem:[#allocation5 + $0x210] sm:$0xff]
    %v138 = vld [vmem:[#allocation5 + $0x218] sm:$0xff]
    %v139 = vld [vmem:[#allocation5 + $0x220] sm:$0xff]
    %v140 = vld [vmem:[#allocation5 + $0x228] sm:$0xff]
    %v141 = vld [vmem:[#allocation5 + $0x230] sm:$0xff]
    %v142 = vld [vmem:[#allocation5 + $0x238] sm:$0xff]
    %v143 = vld [vmem:[#allocation5 + $0x240] sm:$0xff]
    %v144 = vld [vmem:[#allocation5 + $0x248] sm:$0xff]
    %v145 = vld [vmem:[#allocation5 + $0x250] sm:$0xff]
    %v146 = vld [vmem:[#allocation5 + $0x258] sm:$0xff]
    %v147 = vld [vmem:[#allocation5 + $0x260] sm:$0xff]
    %v148 = vld [vmem:[#allocation5 + $0x268] sm:$0xff]
    %v149 = vld [vmem:[#allocation5 + $0x270] sm:$0xff]
    %v150 = vld [vmem:[#allocation5 + $0x278] sm:$0xff]
    %v151 = vld [vmem:[#allocation5 + $0x280] sm:$0xff]
    %v152 = vld [vmem:[#allocation5 + $0x288] sm:$0xff]
    %v153 = vld [vmem:[#allocation5 + $0x290] sm:$0xff]
    %v154 = vld [vmem:[#allocation5 + $0x298] sm:$0xff]
    %v155 = vld [vmem:[#allocation5 + $0x2a0] sm:$0xff]
    %v156 = vld [vmem:[#allocation5 + $0x2a8] sm:$0xff]
    %v157 = vld [vmem:[#allocation5 + $0x2b0] sm:$0xff]
    %v158 = vld [vmem:[#allocation5 + $0x2b8] sm:$0xff]
    %v159 = vld [vmem:[#allocation5 + $0x2c0] sm:$0xff]
    %v160 = vld [vmem:[#allocation5 + $0x2c8] sm:$0xff]
    %v161 = vld [vmem:[#allocation5 + $0x2d0] sm:$0xff]
    %v162 = vld [vmem:[#allocation5 + $0x2d8] sm:$0xff]
    %v163 = vld [vmem:[#allocation5 + $0x2e0] sm:$0xff]
    %v164 = vld [vmem:[#allocation5 + $0x2e8] sm:$0xff]
    %v165 = vld [vmem:[#allocation5 + $0x2f0] sm:$0xff]
    %v166 = vld [vmem:[#allocation5 + $0x2f8] sm:$0xff]
    %v167 = vld [vmem:[#allocation5 + $0x300] sm:$0xff]
    %v168 = vld [vmem:[#allocation5 + $0x308] sm:$0xff]
    %v169 = vld [vmem:[#allocation5 + $0x310] sm:$0xff]
    %v170 = vld [vmem:[#allocation5 + $0x318] sm:$0xff]
    %v171 = vld [vmem:[#allocation5 + $0x320] sm:$0xff]
    %v172 = vld [vmem:[#allocation5 + $0x328] sm:$0xff]
    %v173 = vld [vmem:[#allocation5 + $0x330] sm:$0xff]
    %v174 = vld [vmem:[#allocation5 + $0x338] sm:$0xff]
    %v175 = vld [vmem:[#allocation5 + $0x340] sm:$0xff]
    %v176 = vld [vmem:[#allocation5 + $0x348] sm:$0xff]
    %v177 = vld [vmem:[#allocation5 + $0x350] sm:$0xff]
    %v178 = vld [vmem:[#allocation5 + $0x358] sm:$0xff]
    %v179 = vld [vmem:[#allocation5 + $0x360] sm:$0xff]
    %v180 = vld [vmem:[#allocation5 + $0x368] sm:$0xff]
    %v181 = vld [vmem:[#allocation5 + $0x370] sm:$0xff]
    %v182 = vld [vmem:[#allocation5 + $0x378] sm:$0xff]
    %v183 = vld [vmem:[#allocation5 + $0x380] sm:$0xff]
    %v184 = vld [vmem:[#allocation5 + $0x388] sm:$0xff]
    %v185 = vld [vmem:[#allocation5 + $0x390] sm:$0xff]
    %v186 = vld [vmem:[#allocation5 + $0x398] sm:$0xff]
    %v187 = vld [vmem:[#allocation5 + $0x3a0] sm:$0xff]
    %v188 = vld [vmem:[#allocation5 + $0x3a8] sm:$0xff]
    %v189 = vld [vmem:[#allocation5 + $0x3b0] sm:$0xff]
    %v190 = vld [vmem:[#allocation5 + $0x3b8] sm:$0xff]
    %v191 = vld [vmem:[#allocation5 + $0x3c0] sm:$0xff]
    %v192 = vld [vmem:[#allocation5 + $0x3c8] sm:$0xff]
    %v193 = vld [vmem:[#allocation5 + $0x3d0] sm:$0xff]
    %v194 = vld [vmem:[#allocation5 + $0x3d8] sm:$0xff]
    %v195 = vld [vmem:[#allocation5 + $0x3e0] sm:$0xff]
    %v196 = vld [vmem:[#allocation5 + $0x3e8] sm:$0xff]
    %v197 = vld [vmem:[#allocation5 + $0x3f0] sm:$0xff]
    %v198 = vld [vmem:[#allocation5 + $0x3f8] sm:$0xff]
    %v199 = vld [vmem:[#allocation5 + $0x400] sm:$0xff]
    %v200 = vld [vmem:[#allocation5 + $0x408] sm:$0xff]
    %v201 = vld [vmem:[#allocation5 + $0x410] sm:$0xff]
    %v202 = vld [vmem:[#allocation5 + $0x418] sm:$0xff]
    %v203 = vld [vmem:[#allocation5 + $0x420] sm:$0xff]
    %v204 = vld [vmem:[#allocation5 + $0x428] sm:$0xff]
    %v205 = vld [vmem:[#allocation5 + $0x430] sm:$0xff]
    %v206 = vld [vmem:[#allocation5 + $0x438] sm:$0xff]
    %v207 = vld [vmem:[#allocation5 + $0x440] sm:$0xff]
    %v208 = vld [vmem:[#allocation5 + $0x448] sm:$0xff]
    %v209 = vld [vmem:[#allocation5 + $0x450] sm:$0xff]
    %v210 = vld [vmem:[#allocation5 + $0x458] sm:$0xff]
    %v211 = vld [vmem:[#allocation5 + $0x460] sm:$0xff]
    %v212 = vld [vmem:[#allocation5 + $0x468] sm:$0xff]
    %v213 = vld [vmem:[#allocation5 + $0x470] sm:$0xff]
    %v214 = vld [vmem:[#allocation5 + $0x478] sm:$0xff]
    %v215 = vld [vmem:[#allocation5 + $0x480] sm:$0xff]
    %v216 = vld [vmem:[#allocation5 + $0x488] sm:$0xff]
    %v217 = vld [vmem:[#allocation5 + $0x490] sm:$0xff]
    %v218 = vld [vmem:[#allocation5 + $0x498] sm:$0xff]
    %v219 = vld [vmem:[#allocation5 + $0x4a0] sm:$0xff]
    %v220 = vld [vmem:[#allocation5 + $0x4a8] sm:$0xff]
    %v221 = vld [vmem:[#allocation5 + $0x4b0] sm:$0xff]
    %v222 = vld [vmem:[#allocation5 + $0x4b8] sm:$0xff]
    %v223 = vld [vmem:[#allocation5 + $0x4c0] sm:$0xff]
    %v224 = vld [vmem:[#allocation5 + $0x4c8] sm:$0xff]
    %v225 = vld [vmem:[#allocation5 + $0x4d0] sm:$0xff]
    %v226 = vld [vmem:[#allocation5 + $0x4d8] sm:$0xff]
    %v227 = vld [vmem:[#allocation5 + $0x4e0] sm:$0xff]
    %v228 = vld [vmem:[#allocation5 + $0x4e8] sm:$0xff]
    %v229 = vld [vmem:[#allocation5 + $0x4f0] sm:$0xff]
    %v230 = vld [vmem:[#allocation5 + $0x4f8] sm:$0xff]
    %v231 = vld [vmem:[#allocation5 + $0x500] sm:$0xff]
    %v232 = vld [vmem:[#allocation5 + $0x508] sm:$0xff]
    %v233 = vld [vmem:[#allocation5 + $0x510] sm:$0xff]
    %v234 = vld [vmem:[#allocation5 + $0x518] sm:$0xff]
    %v235 = vld [vmem:[#allocation5 + $0x520] sm:$0xff]
    %v236 = vld [vmem:[#allocation5 + $0x528] sm:$0xff]
    %v237 = vld [vmem:[#allocation5 + $0x530] sm:$0xff]
    %v238 = vld [vmem:[#allocation5 + $0x538] sm:$0xff]
    %v239 = vld [vmem:[#allocation5 + $0x540] sm:$0xff]
    %v240 = vld [vmem:[#allocation5 + $0x548] sm:$0xff]
    %v241 = vld [vmem:[#allocation5 + $0x550] sm:$0xff]
    %v242 = vld [vmem:[#allocation5 + $0x558] sm:$0xff]
    %v243 = vld [vmem:[#allocation5 + $0x560] sm:$0xff]
    %v244 = vld [vmem:[#allocation5 + $0x568] sm:$0xff]
    %v245 = vld [vmem:[#allocation5 + $0x570] sm:$0xff]
    %v246 = vld [vmem:[#allocation5 + $0x578] sm:$0xff]
    %v247 = vld [vmem:[#allocation5 + $0x580] sm:$0xff]
    %v248 = vld [vmem:[#allocation5 + $0x588] sm:$0xff]
    %v249 = vld [vmem:[#allocation5 + $0x590] sm:$0xff]
    %v250 = vld [vmem:[#allocation5 + $0x598] sm:$0xff]
    %v251 = vld [vmem:[#allocation5 + $0x5a0] sm:$0xff]
    %v252 = vld [vmem:[#allocation5 + $0x5a8] sm:$0xff]
    %v253 = vld [vmem:[#allocation5 + $0x5b0] sm:$0xff]
    %v254 = vld [vmem:[#allocation5 + $0x5b8] sm:$0xff]
    %v255 = vld [vmem:[#allocation5 + $0x5c0] sm:$0xff]
    %v256 = vld [vmem:[#allocation5 + $0x5c8] sm:$0xff]
    %v257 = vld [vmem:[#allocation5 + $0x5d0] sm:$0xff]
    %v258 = vld [vmem:[#allocation5 + $0x5d8] sm:$0xff]
    %v259 = vld [vmem:[#allocation5 + $0x5e0] sm:$0xff]
    %v260 = vld [vmem:[#allocation5 + $0x5e8] sm:$0xff]
    %v261 = vld [vmem:[#allocation5 + $0x5f0] sm:$0xff]
    %v262 = vld [vmem:[#allocation5 + $0x5f8] sm:$0xff]
    %v263 = vld [vmem:[#allocation5 + $0x600] sm:$0xff]
    %v264 = vld [vmem:[#allocation5 + $0x608] sm:$0xff]
    %v265 = vld [vmem:[#allocation5 + $0x610] sm:$0xff]
    %v266 = vld [vmem:[#allocation5 + $0x618] sm:$0xff]
    %v267 = vld [vmem:[#allocation5 + $0x620] sm:$0xff]
    %v268 = vld [vmem:[#allocation5 + $0x628] sm:$0xff]
    %v269 = vld [vmem:[#allocation5 + $0x630] sm:$0xff]
    %v270 = vld [vmem:[#allocation5 + $0x638] sm:$0xff]
    %v271 = vld [vmem:[#allocation5 + $0x640] sm:$0xff]
    %v272 = vld [vmem:[#allocation5 + $0x648] sm:$0xff]
    %v273 = vld [vmem:[#allocation5 + $0x650] sm:$0xff]
    %v274 = vld [vmem:[#allocation5 + $0x658] sm:$0xff]
    %v275 = vld [vmem:[#allocation5 + $0x660] sm:$0xff]
    %v276 = vld [vmem:[#allocation5 + $0x668] sm:$0xff]
    %v277 = vld [vmem:[#allocation5 + $0x670] sm:$0xff]
    %v278 = vld [vmem:[#allocation5 + $0x678] sm:$0xff]
    %v279 = vld [vmem:[#allocation5 + $0x680] sm:$0xff]
    %v280 = vld [vmem:[#allocation5 + $0x688] sm:$0xff]
    %v281 = vld [vmem:[#allocation5 + $0x690] sm:$0xff]
    %v282 = vld [vmem:[#allocation5 + $0x698] sm:$0xff]
    %v283 = vld [vmem:[#allocation5 + $0x6a0] sm:$0xff]
    %v284 = vld [vmem:[#allocation5 + $0x6a8] sm:$0xff]
    %v285 = vld [vmem:[#allocation5 + $0x6b0] sm:$0xff]
    %v286 = vld [vmem:[#allocation5 + $0x6b8] sm:$0xff]
    %v287 = vld [vmem:[#allocation5 + $0x6c0] sm:$0xff]
    %v288 = vld [vmem:[#allocation5 + $0x6c8] sm:$0xff]
    %v289 = vld [vmem:[#allocation5 + $0x6d0] sm:$0xff]
    %v290 = vld [vmem:[#allocation5 + $0x6d8] sm:$0xff]
    %v291 = vld [vmem:[#allocation5 + $0x6e0] sm:$0xff]
    %v292 = vld [vmem:[#allocation5 + $0x6e8] sm:$0xff]
    %v293 = vld [vmem:[#allocation5 + $0x6f0] sm:$0xff]
    %v294 = vld [vmem:[#allocation5 + $0x6f8] sm:$0xff]
    %v295 = vld [vmem:[#allocation5 + $0x700] sm:$0xff]
    %v296 = vld [vmem:[#allocation5 + $0x708] sm:$0xff]
    %v297 = vld [vmem:[#allocation5 + $0x710] sm:$0xff]
    %v298 = vld [vmem:[#allocation5 + $0x718] sm:$0xff]
    %v299 = vld [vmem:[#allocation5 + $0x720] sm:$0xff]
    %v300 = vld [vmem:[#allocation5 + $0x728] sm:$0xff]
    %v301 = vld [vmem:[#allocation5 + $0x730] sm:$0xff]
    %v302 = vld [vmem:[#allocation5 + $0x738] sm:$0xff]
    %v303 = vld [vmem:[#allocation5 + $0x740] sm:$0xff]
    %v304 = vld [vmem:[#allocation5 + $0x748] sm:$0xff]
    %v305 = vld [vmem:[#allocation5 + $0x750] sm:$0xff]
    %v306 = vld [vmem:[#allocation5 + $0x758] sm:$0xff]
    %v307 = vld [vmem:[#allocation5 + $0x760] sm:$0xff]
    %v308 = vld [vmem:[#allocation5 + $0x768] sm:$0xff]
    %v309 = vld [vmem:[#allocation5 + $0x770] sm:$0xff]
    %v310 = vld [vmem:[#allocation5 + $0x778] sm:$0xff]
    %v320 = vunpack.c.l.b16 %v62
    %v321 = vunpack.c.h.b16 %v62
    %v322 = vunpack.c.l.b16 %v63
    %v323 = vunpack.c.h.b16 %v63
    %v324 = vunpack.c.l.b16 %v64
    %v325 = vunpack.c.l.b16 %v65
    %v326 = vunpack.c.h.b16 %v65
    %v327 = vunpack.c.l.b16 %v66
    %v328 = vunpack.c.h.b16 %v66
    %v329 = vunpack.c.l.b16 %v67
    %v330 = vunpack.c.l.b16 %v68
    %v331 = vunpack.c.h.b16 %v68
    %v332 = vunpack.c.l.b16 %v69
    %v333 = vunpack.c.h.b16 %v69
    %v334 = vunpack.c.l.b16 %v70
    %v335 = vpack.c.b16 %v325, %v320
    %v336 = vpack.c.b16 %v326, %v321
    %v337 = vpack.c.b16 %v327, %v322
    %v338 = vpack.c.b16 %v328, %v323
    %v339 = vpack.c.b16 %v329, %v324
    %v340 = vpack.c.b16 %v330, %v330
    %v341 = vpack.c.b16 %v331, %v331
    %v342 = vpack.c.b16 %v332, %v332
    %v343 = vpack.c.b16 %v333, %v333
    %v344 = vpack.c.b16 %v334, %v334
    %v595 = vunpack.c.l.b16 %v71
    %v596 = vunpack.c.h.b16 %v71
    %v597 = vunpack.c.l.b16 %v72
    %v598 = vunpack.c.h.b16 %v72
    %v599 = vunpack.c.l.b16 %v73
    %v600 = vunpack.c.h.b16 %v73
    %v601 = vunpack.c.l.b16 %v74
    %v602 = vunpack.c.h.b16 %v74
    %v603 = vunpack.c.l.b16 %v75
    %v604 = vunpack.c.h.b16 %v75
    %v605 = vunpack.c.l.b16 %v76
    %v606 = vunpack.c.h.b16 %v76
    %v607 = vunpack.c.l.b16 %v77
    %v608 = vunpack.c.h.b16 %v77
    %v609 = vunpack.c.l.b16 %v78
    %v610 = vunpack.c.h.b16 %v78
    %v611 = vunpack.c.l.b16 %v79
    %v612 = vunpack.c.h.b16 %v79
    %v613 = vunpack.c.l.b16 %v80
    %v614 = vunpack.c.h.b16 %v80
    %v615 = vunpack.c.l.b16 %v81
    %v616 = vunpack.c.h.b16 %v81
    %v617 = vunpack.c.l.b16 %v82
    %v618 = vunpack.c.h.b16 %v82
    %v619 = vunpack.c.l.b16 %v83
    %v620 = vunpack.c.h.b16 %v83
    %v621 = vunpack.c.l.b16 %v84
    %v622 = vunpack.c.h.b16 %v84
    %v623 = vunpack.c.l.b16 %v85
    %v624 = vunpack.c.h.b16 %v85
    %v625 = vunpack.c.l.b16 %v86
    %v626 = vunpack.c.h.b16 %v86
    %v627 = vunpack.c.l.b16 %v87
    %v628 = vunpack.c.h.b16 %v87
    %v629 = vunpack.c.l.b16 %v88
    %v630 = vunpack.c.h.b16 %v88
    %v631 = vunpack.c.l.b16 %v89
    %v632 = vunpack.c.h.b16 %v89
    %v633 = vunpack.c.l.b16 %v90
    %v634 = vunpack.c.h.b16 %v90
    %v635 = vunpack.c.l.b16 %v91
    %v636 = vunpack.c.h.b16 %v91
    %v637 = vunpack.c.l.b16 %v92
    %v638 = vunpack.c.h.b16 %v92
    %v639 = vunpack.c.l.b16 %v93
    %v640 = vunpack.c.h.b16 %v93
    %v641 = vunpack.c.l.b16 %v94
    %v642 = vunpack.c.h.b16 %v94
    %v643 = vunpack.c.l.b16 %v95
    %v644 = vunpack.c.h.b16 %v95
    %v645 = vunpack.c.l.b16 %v96
    %v646 = vunpack.c.h.b16 %v96
    %v647 = vunpack.c.l.b16 %v97
    %v648 = vunpack.c.h.b16 %v97
    %v649 = vunpack.c.l.b16 %v98
    %v650 = vunpack.c.h.b16 %v98
    %v651 = vunpack.c.l.b16 %v99
    %v652 = vunpack.c.h.b16 %v99
    %v653 = vunpack.c.l.b16 %v100
    %v654 = vunpack.c.h.b16 %v100
    %v655 = vunpack.c.l.b16 %v101
    %v656 = vunpack.c.h.b16 %v101
    %v657 = vunpack.c.l.b16 %v102
    %v658 = vunpack.c.h.b16 %v102
    %v659 = vunpack.c.l.b16 %v103
    %v660 = vunpack.c.h.b16 %v103
    %v661 = vunpack.c.l.b16 %v104
    %v662 = vunpack.c.h.b16 %v104
    %v663 = vunpack.c.l.b16 %v105
    %v664 = vunpack.c.h.b16 %v105
    %v665 = vunpack.c.l.b16 %v106
    %v666 = vunpack.c.h.b16 %v106
    %v667 = vunpack.c.l.b16 %v107
    %v668 = vunpack.c.h.b16 %v107
    %v669 = vunpack.c.l.b16 %v108
    %v670 = vunpack.c.h.b16 %v108
    %v671 = vunpack.c.l.b16 %v109
    %v672 = vunpack.c.h.b16 %v109
    %v673 = vunpack.c.l.b16 %v110
    %v674 = vunpack.c.h.b16 %v110
    %v675 = vunpack.c.l.b16 %v111
    %v676 = vunpack.c.h.b16 %v111
    %v677 = vunpack.c.l.b16 %v112
    %v678 = vunpack.c.h.b16 %v112
    %v679 = vunpack.c.l.b16 %v113
    %v680 = vunpack.c.h.b16 %v113
    %v681 = vunpack.c.l.b16 %v114
    %v682 = vunpack.c.h.b16 %v114
    %v683 = vunpack.c.l.b16 %v115
    %v684 = vunpack.c.h.b16 %v115
    %v685 = vunpack.c.l.b16 %v116
    %v686 = vunpack.c.h.b16 %v116
    %v687 = vunpack.c.l.b16 %v117
    %v688 = vunpack.c.h.b16 %v117
    %v689 = vunpack.c.l.b16 %v118
    %v690 = vunpack.c.h.b16 %v118
    %v691 = vunpack.c.l.b16 %v119
    %v692 = vunpack.c.h.b16 %v119
    %v693 = vunpack.c.l.b16 %v120
    %v694 = vunpack.c.h.b16 %v120
    %v695 = vunpack.c.l.b16 %v121
    %v696 = vunpack.c.h.b16 %v121
    %v697 = vunpack.c.l.b16 %v122
    %v698 = vunpack.c.h.b16 %v122
    %v699 = vunpack.c.l.b16 %v123
    %v700 = vunpack.c.h.b16 %v123
    %v701 = vunpack.c.l.b16 %v124
    %v702 = vunpack.c.h.b16 %v124
    %v703 = vunpack.c.l.b16 %v125
    %v704 = vunpack.c.h.b16 %v125
    %v705 = vunpack.c.l.b16 %v126
    %v706 = vunpack.c.h.b16 %v126
    %v707 = vunpack.c.l.b16 %v127
    %v708 = vunpack.c.h.b16 %v127
    %v709 = vunpack.c.l.b16 %v128
    %v710 = vunpack.c.h.b16 %v128
    %v711 = vunpack.c.l.b16 %v129
    %v712 = vunpack.c.h.b16 %v129
    %v713 = vunpack.c.l.b16 %v130
    %v714 = vunpack.c.h.b16 %v130
    %v715 = vunpack.c.l.b16 %v131
    %v716 = vunpack.c.h.b16 %v131
    %v717 = vunpack.c.l.b16 %v132
    %v718 = vunpack.c.h.b16 %v132
    %v719 = vunpack.c.l.b16 %v133
    %v720 = vunpack.c.h.b16 %v133
    %v721 = vunpack.c.l.b16 %v134
    %v722 = vunpack.c.h.b16 %v134
    %v723 = vunpack.c.l.b16 %v135
    %v724 = vunpack.c.h.b16 %v135
    %v725 = vunpack.c.l.b16 %v136
    %v726 = vunpack.c.h.b16 %v136
    %v727 = vunpack.c.l.b16 %v137
    %v728 = vunpack.c.h.b16 %v137
    %v729 = vunpack.c.l.b16 %v138
    %v730 = vunpack.c.h.b16 %v138
    %v731 = vunpack.c.l.b16 %v139
    %v732 = vunpack.c.h.b16 %v139
    %v733 = vunpack.c.l.b16 %v140
    %v734 = vunpack.c.h.b16 %v140
    %v735 = vunpack.c.l.b16 %v141
    %v736 = vunpack.c.h.b16 %v141
    %v737 = vunpack.c.l.b16 %v142
    %v738 = vunpack.c.h.b16 %v142
    %v739 = vunpack.c.l.b16 %v143
    %v740 = vunpack.c.h.b16 %v143
    %v741 = vunpack.c.l.b16 %v144
    %v742 = vunpack.c.h.b16 %v144
    %v743 = vunpack.c.l.b16 %v145
    %v744 = vunpack.c.h.b16 %v145
    %v745 = vunpack.c.l.b16 %v146
    %v746 = vunpack.c.h.b16 %v146
    %v747 = vunpack.c.l.b16 %v147
    %v748 = vunpack.c.h.b16 %v147
    %v749 = vunpack.c.l.b16 %v148
    %v750 = vunpack.c.h.b16 %v148
    %v751 = vunpack.c.l.b16 %v149
    %v752 = vunpack.c.h.b16 %v149
    %v753 = vunpack.c.l.b16 %v150
    %v754 = vunpack.c.h.b16 %v150
    %v755 = vunpack.c.l.b16 %v151
    %v756 = vunpack.c.h.b16 %v151
    %v757 = vunpack.c.l.b16 %v152
    %v758 = vunpack.c.h.b16 %v152
    %v759 = vunpack.c.l.b16 %v153
    %v760 = vunpack.c.h.b16 %v153
    %v761 = vunpack.c.l.b16 %v154
    %v762 = vunpack.c.h.b16 %v154
    %v763 = vunpack.c.l.b16 %v155
    %v764 = vunpack.c.h.b16 %v155
    %v765 = vunpack.c.l.b16 %v156
    %v766 = vunpack.c.h.b16 %v156
    %v767 = vunpack.c.l.b16 %v157
    %v768 = vunpack.c.h.b16 %v157
    %v769 = vunpack.c.l.b16 %v158
    %v770 = vunpack.c.h.b16 %v158
    %v771 = vunpack.c.l.b16 %v159
    %v772 = vunpack.c.h.b16 %v159
    %v773 = vunpack.c.l.b16 %v160
    %v774 = vunpack.c.h.b16 %v160
    %v775 = vunpack.c.l.b16 %v161
    %v776 = vunpack.c.h.b16 %v161
    %v777 = vunpack.c.l.b16 %v162
    %v778 = vunpack.c.h.b16 %v162
    %v779 = vunpack.c.l.b16 %v163
    %v780 = vunpack.c.h.b16 %v163
    %v781 = vunpack.c.l.b16 %v164
    %v782 = vunpack.c.h.b16 %v164
    %v783 = vunpack.c.l.b16 %v165
    %v784 = vunpack.c.h.b16 %v165
    %v785 = vunpack.c.l.b16 %v166
    %v786 = vunpack.c.h.b16 %v166
    %v787 = vunpack.c.l.b16 %v167
    %v788 = vunpack.c.h.b16 %v167
    %v789 = vunpack.c.l.b16 %v168
    %v790 = vunpack.c.h.b16 %v168
    %v791 = vunpack.c.l.b16 %v169
    %v792 = vunpack.c.h.b16 %v169
    %v793 = vunpack.c.l.b16 %v170
    %v794 = vunpack.c.h.b16 %v170
    %v795 = vunpack.c.l.b16 %v171
    %v796 = vunpack.c.h.b16 %v171
    %v797 = vunpack.c.l.b16 %v172
    %v798 = vunpack.c.h.b16 %v172
    %v799 = vunpack.c.l.b16 %v173
    %v800 = vunpack.c.h.b16 %v173
    %v801 = vunpack.c.l.b16 %v174
    %v802 = vunpack.c.h.b16 %v174
    %v803 = vunpack.c.l.b16 %v175
    %v804 = vunpack.c.h.b16 %v175
    %v805 = vunpack.c.l.b16 %v176
    %v806 = vunpack.c.h.b16 %v176
    %v807 = vunpack.c.l.b16 %v177
    %v808 = vunpack.c.h.b16 %v177
    %v809 = vunpack.c.l.b16 %v178
    %v810 = vunpack.c.h.b16 %v178
    %v811 = vunpack.c.l.b16 %v179
    %v812 = vunpack.c.h.b16 %v179
    %v813 = vunpack.c.l.b16 %v180
    %v814 = vunpack.c.h.b16 %v180
    %v815 = vunpack.c.l.b16 %v181
    %v816 = vunpack.c.h.b16 %v181
    %v817 = vunpack.c.l.b16 %v182
    %v818 = vunpack.c.h.b16 %v182
    %v819 = vunpack.c.l.b16 %v183
    %v820 = vunpack.c.h.b16 %v183
    %v821 = vunpack.c.l.b16 %v184
    %v822 = vunpack.c.h.b16 %v184
    %v823 = vunpack.c.l.b16 %v185
    %v824 = vunpack.c.h.b16 %v185
    %v825 = vunpack.c.l.b16 %v186
    %v826 = vunpack.c.h.b16 %v186
    %v827 = vunpack.c.l.b16 %v187
    %v828 = vunpack.c.h.b16 %v187
    %v829 = vunpack.c.l.b16 %v188
    %v830 = vunpack.c.h.b16 %v188
    %v831 = vunpack.c.l.b16 %v189
    %v832 = vunpack.c.h.b16 %v189
    %v833 = vunpack.c.l.b16 %v190
    %v834 = vunpack.c.h.b16 %v190
    %v835 = vunpack.c.l.b16 %v191
    %v836 = vunpack.c.h.b16 %v191
    %v837 = vunpack.c.l.b16 %v192
    %v838 = vunpack.c.h.b16 %v192
    %v839 = vunpack.c.l.b16 %v193
    %v840 = vunpack.c.h.b16 %v193
    %v841 = vunpack.c.l.b16 %v194
    %v842 = vunpack.c.h.b16 %v194
    %v843 = vunpack.c.l.b16 %v195
    %v844 = vunpack.c.h.b16 %v195
    %v845 = vunpack.c.l.b16 %v196
    %v846 = vunpack.c.h.b16 %v196
    %v847 = vunpack.c.l.b16 %v197
    %v848 = vunpack.c.h.b16 %v197
    %v849 = vunpack.c.l.b16 %v198
    %v850 = vunpack.c.h.b16 %v198
    %v851 = vunpack.c.l.b16 %v199
    %v852 = vunpack.c.h.b16 %v199
    %v853 = vunpack.c.l.b16 %v200
    %v854 = vunpack.c.h.b16 %v200
    %v855 = vunpack.c.l.b16 %v201
    %v856 = vunpack.c.h.b16 %v201
    %v857 = vunpack.c.l.b16 %v202
    %v858 = vunpack.c.h.b16 %v202
    %v859 = vunpack.c.l.b16 %v203
    %v860 = vunpack.c.h.b16 %v203
    %v861 = vunpack.c.l.b16 %v204
    %v862 = vunpack.c.h.b16 %v204
    %v863 = vunpack.c.l.b16 %v205
    %v864 = vunpack.c.h.b16 %v205
    %v865 = vunpack.c.l.b16 %v206
    %v866 = vunpack.c.h.b16 %v206
    %v867 = vunpack.c.l.b16 %v207
    %v868 = vunpack.c.h.b16 %v207
    %v869 = vunpack.c.l.b16 %v208
    %v870 = vunpack.c.h.b16 %v208
    %v871 = vunpack.c.l.b16 %v209
    %v872 = vunpack.c.h.b16 %v209
    %v873 = vunpack.c.l.b16 %v210
    %v874 = vunpack.c.h.b16 %v210
    %v875 = vunpack.c.l.b16 %v211
    %v876 = vunpack.c.h.b16 %v211
    %v877 = vunpack.c.l.b16 %v212
    %v878 = vunpack.c.h.b16 %v212
    %v879 = vunpack.c.l.b16 %v213
    %v880 = vunpack.c.h.b16 %v213
    %v881 = vunpack.c.l.b16 %v214
    %v882 = vunpack.c.h.b16 %v214
    %v883 = vunpack.c.l.b16 %v215
    %v884 = vunpack.c.h.b16 %v215
    %v885 = vunpack.c.l.b16 %v216
    %v886 = vunpack.c.h.b16 %v216
    %v887 = vunpack.c.l.b16 %v217
    %v888 = vunpack.c.h.b16 %v217
    %v889 = vunpack.c.l.b16 %v218
    %v890 = vunpack.c.h.b16 %v218
    %v891 = vunpack.c.l.b16 %v219
    %v892 = vunpack.c.h.b16 %v219
    %v893 = vunpack.c.l.b16 %v220
    %v894 = vunpack.c.h.b16 %v220
    %v895 = vunpack.c.l.b16 %v221
    %v896 = vunpack.c.h.b16 %v221
    %v897 = vunpack.c.l.b16 %v222
    %v898 = vunpack.c.h.b16 %v222
    %v899 = vunpack.c.l.b16 %v223
    %v900 = vunpack.c.h.b16 %v223
    %v901 = vunpack.c.l.b16 %v224
    %v902 = vunpack.c.h.b16 %v224
    %v903 = vunpack.c.l.b16 %v225
    %v904 = vunpack.c.h.b16 %v225
    %v905 = vunpack.c.l.b16 %v226
    %v906 = vunpack.c.h.b16 %v226
    %v907 = vunpack.c.l.b16 %v227
    %v908 = vunpack.c.h.b16 %v227
    %v909 = vunpack.c.l.b16 %v228
    %v910 = vunpack.c.h.b16 %v228
    %v911 = vunpack.c.l.b16 %v229
    %v912 = vunpack.c.h.b16 %v229
    %v913 = vunpack.c.l.b16 %v230
    %v914 = vunpack.c.h.b16 %v230
    %v915 = vunpack.c.l.b16 %v231
    %v916 = vunpack.c.h.b16 %v231
    %v917 = vunpack.c.l.b16 %v232
    %v918 = vunpack.c.h.b16 %v232
    %v919 = vunpack.c.l.b16 %v233
    %v920 = vunpack.c.h.b16 %v233
    %v921 = vunpack.c.l.b16 %v234
    %v922 = vunpack.c.h.b16 %v234
    %v923 = vunpack.c.l.b16 %v235
    %v924 = vunpack.c.h.b16 %v235
    %v925 = vunpack.c.l.b16 %v236
    %v926 = vunpack.c.h.b16 %v236
    %v927 = vunpack.c.l.b16 %v237
    %v928 = vunpack.c.h.b16 %v237
    %v929 = vunpack.c.l.b16 %v238
    %v930 = vunpack.c.h.b16 %v238
    %v931 = vunpack.c.l.b16 %v239
    %v932 = vunpack.c.h.b16 %v239
    %v933 = vunpack.c.l.b16 %v240
    %v934 = vunpack.c.h.b16 %v240
    %v935 = vunpack.c.l.b16 %v241
    %v936 = vunpack.c.h.b16 %v241
    %v937 = vunpack.c.l.b16 %v242
    %v938 = vunpack.c.h.b16 %v242
    %v939 = vunpack.c.l.b16 %v243
    %v940 = vunpack.c.h.b16 %v243
    %v941 = vunpack.c.l.b16 %v244
    %v942 = vunpack.c.h.b16 %v244
    %v943 = vunpack.c.l.b16 %v245
    %v944 = vunpack.c.h.b16 %v245
    %v945 = vunpack.c.l.b16 %v246
    %v946 = vunpack.c.h.b16 %v246
    %v947 = vunpack.c.l.b16 %v247
    %v948 = vunpack.c.h.b16 %v247
    %v949 = vunpack.c.l.b16 %v248
    %v950 = vunpack.c.h.b16 %v248
    %v951 = vunpack.c.l.b16 %v249
    %v952 = vunpack.c.h.b16 %v249
    %v953 = vunpack.c.l.b16 %v250
    %v954 = vunpack.c.h.b16 %v250
    %v955 = vunpack.c.l.b16 %v251
    %v956 = vunpack.c.h.b16 %v251
    %v957 = vunpack.c.l.b16 %v252
    %v958 = vunpack.c.h.b16 %v252
    %v959 = vunpack.c.l.b16 %v253
    %v960 = vunpack.c.h.b16 %v253
    %v961 = vunpack.c.l.b16 %v254
    %v962 = vunpack.c.h.b16 %v254
    %v963 = vunpack.c.l.b16 %v255
    %v964 = vunpack.c.h.b16 %v255
    %v965 = vunpack.c.l.b16 %v256
    %v966 = vunpack.c.h.b16 %v256
    %v967 = vunpack.c.l.b16 %v257
    %v968 = vunpack.c.h.b16 %v257
    %v969 = vunpack.c.l.b16 %v258
    %v970 = vunpack.c.h.b16 %v258
    %v971 = vunpack.c.l.b16 %v259
    %v972 = vunpack.c.h.b16 %v259
    %v973 = vunpack.c.l.b16 %v260
    %v974 = vunpack.c.h.b16 %v260
    %v975 = vunpack.c.l.b16 %v261
    %v976 = vunpack.c.h.b16 %v261
    %v977 = vunpack.c.l.b16 %v262
    %v978 = vunpack.c.h.b16 %v262
    %v979 = vunpack.c.l.b16 %v263
    %v980 = vunpack.c.h.b16 %v263
    %v981 = vunpack.c.l.b16 %v264
    %v982 = vunpack.c.h.b16 %v264
    %v983 = vunpack.c.l.b16 %v265
    %v984 = vunpack.c.h.b16 %v265
    %v985 = vunpack.c.l.b16 %v266
    %v986 = vunpack.c.h.b16 %v266
    %v987 = vunpack.c.l.b16 %v267
    %v988 = vunpack.c.h.b16 %v267
    %v989 = vunpack.c.l.b16 %v268
    %v990 = vunpack.c.h.b16 %v268
    %v991 = vunpack.c.l.b16 %v269
    %v992 = vunpack.c.h.b16 %v269
    %v993 = vunpack.c.l.b16 %v270
    %v994 = vunpack.c.h.b16 %v270
    %v995 = vunpack.c.l.b16 %v271
    %v996 = vunpack.c.h.b16 %v271
    %v997 = vunpack.c.l.b16 %v272
    %v998 = vunpack.c.h.b16 %v272
    %v999 = vunpack.c.l.b16 %v273
    %v1000 = vunpack.c.h.b16 %v273
    %v1001 = vunpack.c.l.b16 %v274
    %v1002 = vunpack.c.h.b16 %v274
    %v1003 = vunpack.c.l.b16 %v275
    %v1004 = vunpack.c.h.b16 %v275
    %v1005 = vunpack.c.l.b16 %v276
    %v1006 = vunpack.c.h.b16 %v276
    %v1007 = vunpack.c.l.b16 %v277
    %v1008 = vunpack.c.h.b16 %v277
    %v1009 = vunpack.c.l.b16 %v278
    %v1010 = vunpack.c.h.b16 %v278
    %v1011 = vunpack.c.l.b16 %v279
    %v1012 = vunpack.c.h.b16 %v279
    %v1013 = vunpack.c.l.b16 %v280
    %v1014 = vunpack.c.h.b16 %v280
    %v1015 = vunpack.c.l.b16 %v281
    %v1016 = vunpack.c.h.b16 %v281
    %v1017 = vunpack.c.l.b16 %v282
    %v1018 = vunpack.c.h.b16 %v282
    %v1019 = vunpack.c.l.b16 %v283
    %v1020 = vunpack.c.h.b16 %v283
    %v1021 = vunpack.c.l.b16 %v284
    %v1022 = vunpack.c.h.b16 %v284
    %v1023 = vunpack.c.l.b16 %v285
    %v1024 = vunpack.c.h.b16 %v285
    %v1025 = vunpack.c.l.b16 %v286
    %v1026 = vunpack.c.h.b16 %v286
    %v1027 = vunpack.c.l.b16 %v287
    %v1028 = vunpack.c.h.b16 %v287
    %v1029 = vunpack.c.l.b16 %v288
    %v1030 = vunpack.c.h.b16 %v288
    %v1031 = vunpack.c.l.b16 %v289
    %v1032 = vunpack.c.h.b16 %v289
    %v1033 = vunpack.c.l.b16 %v290
    %v1034 = vunpack.c.h.b16 %v290
    %v1035 = vunpack.c.l.b16 %v291
    %v1036 = vunpack.c.h.b16 %v291
    %v1037 = vunpack.c.l.b16 %v292
    %v1038 = vunpack.c.h.b16 %v292
    %v1039 = vunpack.c.l.b16 %v293
    %v1040 = vunpack.c.h.b16 %v293
    %v1041 = vunpack.c.l.b16 %v294
    %v1042 = vunpack.c.h.b16 %v294
    %v1043 = vunpack.c.l.b16 %v295
    %v1044 = vunpack.c.h.b16 %v295
    %v1045 = vunpack.c.l.b16 %v296
    %v1046 = vunpack.c.h.b16 %v296
    %v1047 = vunpack.c.l.b16 %v297
    %v1048 = vunpack.c.h.b16 %v297
    %v1049 = vunpack.c.l.b16 %v298
    %v1050 = vunpack.c.h.b16 %v298
    %v1051 = vunpack.c.l.b16 %v299
    %v1052 = vunpack.c.h.b16 %v299
    %v1053 = vunpack.c.l.b16 %v300
    %v1054 = vunpack.c.h.b16 %v300
    %v1055 = vunpack.c.l.b16 %v301
    %v1056 = vunpack.c.h.b16 %v301
    %v1057 = vunpack.c.l.b16 %v302
    %v1058 = vunpack.c.h.b16 %v302
    %v1059 = vunpack.c.l.b16 %v303
    %v1060 = vunpack.c.h.b16 %v303
    %v1061 = vunpack.c.l.b16 %v304
    %v1062 = vunpack.c.h.b16 %v304
    %v1063 = vunpack.c.l.b16 %v305
    %v1064 = vunpack.c.h.b16 %v305
    %v1065 = vunpack.c.l.b16 %v306
    %v1066 = vunpack.c.h.b16 %v306
    %v1067 = vunpack.c.l.b16 %v307
    %v1068 = vunpack.c.h.b16 %v307
    %v1069 = vunpack.c.l.b16 %v308
    %v1070 = vunpack.c.h.b16 %v308
    %v1071 = vunpack.c.l.b16 %v309
    %v1072 = vunpack.c.h.b16 %v309
    %v1073 = vunpack.c.l.b16 %v310
    %v1074 = vunpack.c.h.b16 %v310
    %v1075 = vpack.c.b16 %v601, %v595
    %v1076 = vpack.c.b16 %v602, %v596
    %v1077 = vpack.c.b16 %v603, %v597
    %v1078 = vpack.c.b16 %v604, %v598
    %v1079 = vpack.c.b16 %v605, %v599
    %v1080 = vpack.c.b16 %v606, %v600
    %v1081 = vpack.c.b16 %v613, %v607
    %v1082 = vpack.c.b16 %v614, %v608
    %v1083 = vpack.c.b16 %v615, %v609
    %v1084 = vpack.c.b16 %v616, %v610
    %v1085 = vpack.c.b16 %v617, %v611
    %v1086 = vpack.c.b16 %v618, %v612
    %v1087 = vpack.c.b16 %v625, %v619
    %v1088 = vpack.c.b16 %v626, %v620
    %v1089 = vpack.c.b16 %v627, %v621
    %v1090 = vpack.c.b16 %v628, %v622
    %v1091 = vpack.c.b16 %v629, %v623
    %v1092 = vpack.c.b16 %v630, %v624
    %v1093 = vpack.c.b16 %v637, %v631
    %v1094 = vpack.c.b16 %v638, %v632
    %v1095 = vpack.c.b16 %v639, %v633
    %v1096 = vpack.c.b16 %v640, %v634
    %v1097 = vpack.c.b16 %v641, %v635
    %v1098 = vpack.c.b16 %v642, %v636
    %v1099 = vpack.c.b16 %v649, %v643
    %v1100 = vpack.c.b16 %v650, %v644
    %v1101 = vpack.c.b16 %v651, %v645
    %v1102 = vpack.c.b16 %v652, %v646
    %v1103 = vpack.c.b16 %v653, %v647
    %v1104 = vpack.c.b16 %v654, %v648
    %v1105 = vpack.c.b16 %v661, %v655
    %v1106 = vpack.c.b16 %v662, %v656
    %v1107 = vpack.c.b16 %v663, %v657
    %v1108 = vpack.c.b16 %v664, %v658
    %v1109 = vpack.c.b16 %v665, %v659
    %v1110 = vpack.c.b16 %v666, %v660
    %v1111 = vpack.c.b16 %v673, %v667
    %v1112 = vpack.c.b16 %v674, %v668
    %v1113 = vpack.c.b16 %v675, %v669
    %v1114 = vpack.c.b16 %v676, %v670
    %v1115 = vpack.c.b16 %v677, %v671
    %v1116 = vpack.c.b16 %v678, %v672
    %v1117 = vpack.c.b16 %v685, %v679
    %v1118 = vpack.c.b16 %v686, %v680
    %v1119 = vpack.c.b16 %v687, %v681
    %v1120 = vpack.c.b16 %v688, %v682
    %v1121 = vpack.c.b16 %v689, %v683
    %v1122 = vpack.c.b16 %v690, %v684
    %v1123 = vpack.c.b16 %v697, %v691
    %v1124 = vpack.c.b16 %v698, %v692
    %v1125 = vpack.c.b16 %v699, %v693
    %v1126 = vpack.c.b16 %v700, %v694
    %v1127 = vpack.c.b16 %v701, %v695
    %v1128 = vpack.c.b16 %v702, %v696
    %v1129 = vpack.c.b16 %v709, %v703
    %v1130 = vpack.c.b16 %v710, %v704
    %v1131 = vpack.c.b16 %v711, %v705
    %v1132 = vpack.c.b16 %v712, %v706
    %v1133 = vpack.c.b16 %v713, %v707
    %v1134 = vpack.c.b16 %v714, %v708
    %v1135 = vpack.c.b16 %v721, %v715
    %v1136 = vpack.c.b16 %v722, %v716
    %v1137 = vpack.c.b16 %v723, %v717
    %v1138 = vpack.c.b16 %v724, %v718
    %v1139 = vpack.c.b16 %v725, %v719
    %v1140 = vpack.c.b16 %v726, %v720
    %v1141 = vpack.c.b16 %v733, %v727
    %v1142 = vpack.c.b16 %v734, %v728
    %v1143 = vpack.c.b16 %v735, %v729
    %v1144 = vpack.c.b16 %v736, %v730
    %v1145 = vpack.c.b16 %v737, %v731
    %v1146 = vpack.c.b16 %v738, %v732
    %v1147 = vpack.c.b16 %v745, %v739
    %v1148 = vpack.c.b16 %v746, %v740
    %v1149 = vpack.c.b16 %v747, %v741
    %v1150 = vpack.c.b16 %v748, %v742
    %v1151 = vpack.c.b16 %v749, %v743
    %v1152 = vpack.c.b16 %v750, %v744
    %v1153 = vpack.c.b16 %v757, %v751
    %v1154 = vpack.c.b16 %v758, %v752
    %v1155 = vpack.c.b16 %v759, %v753
    %v1156 = vpack.c.b16 %v760, %v754
    %v1157 = vpack.c.b16 %v761, %v755
    %v1158 = vpack.c.b16 %v762, %v756
    %v1159 = vpack.c.b16 %v769, %v763
    %v1160 = vpack.c.b16 %v770, %v764
    %v1161 = vpack.c.b16 %v771, %v765
    %v1162 = vpack.c.b16 %v772, %v766
    %v1163 = vpack.c.b16 %v773, %v767
    %v1164 = vpack.c.b16 %v774, %v768
    %v1165 = vpack.c.b16 %v781, %v775
    %v1166 = vpack.c.b16 %v782, %v776
    %v1167 = vpack.c.b16 %v783, %v777
    %v1168 = vpack.c.b16 %v784, %v778
    %v1169 = vpack.c.b16 %v785, %v779
    %v1170 = vpack.c.b16 %v786, %v780
    %v1171 = vpack.c.b16 %v793, %v787
    %v1172 = vpack.c.b16 %v794, %v788
    %v1173 = vpack.c.b16 %v795, %v789
    %v1174 = vpack.c.b16 %v796, %v790
    %v1175 = vpack.c.b16 %v797, %v791
    %v1176 = vpack.c.b16 %v798, %v792
    %v1177 = vpack.c.b16 %v805, %v799
    %v1178 = vpack.c.b16 %v806, %v800
    %v1179 = vpack.c.b16 %v807, %v801
    %v1180 = vpack.c.b16 %v808, %v802
    %v1181 = vpack.c.b16 %v809, %v803
    %v1182 = vpack.c.b16 %v810, %v804
    %v1183 = vpack.c.b16 %v817, %v811
    %v1184 = vpack.c.b16 %v818, %v812
    %v1185 = vpack.c.b16 %v819, %v813
    %v1186 = vpack.c.b16 %v820, %v814
    %v1187 = vpack.c.b16 %v821, %v815
    %v1188 = vpack.c.b16 %v822, %v816
    %v1189 = vpack.c.b16 %v829, %v823
    %v1190 = vpack.c.b16 %v830, %v824
    %v1191 = vpack.c.b16 %v831, %v825
    %v1192 = vpack.c.b16 %v832, %v826
    %v1193 = vpack.c.b16 %v833, %v827
    %v1194 = vpack.c.b16 %v834, %v828
    %v1195 = vpack.c.b16 %v841, %v835
    %v1196 = vpack.c.b16 %v842, %v836
    %v1197 = vpack.c.b16 %v843, %v837
    %v1198 = vpack.c.b16 %v844, %v838
    %v1199 = vpack.c.b16 %v845, %v839
    %v1200 = vpack.c.b16 %v846, %v840
    %v1201 = vpack.c.b16 %v853, %v847
    %v1202 = vpack.c.b16 %v854, %v848
    %v1203 = vpack.c.b16 %v855, %v849
    %v1204 = vpack.c.b16 %v856, %v850
    %v1205 = vpack.c.b16 %v857, %v851
    %v1206 = vpack.c.b16 %v858, %v852
    %v1207 = vpack.c.b16 %v865, %v859
    %v1208 = vpack.c.b16 %v866, %v860
    %v1209 = vpack.c.b16 %v867, %v861
    %v1210 = vpack.c.b16 %v868, %v862
    %v1211 = vpack.c.b16 %v869, %v863
    %v1212 = vpack.c.b16 %v870, %v864
    %v1213 = vpack.c.b16 %v877, %v871
    %v1214 = vpack.c.b16 %v878, %v872
    %v1215 = vpack.c.b16 %v879, %v873
    %v1216 = vpack.c.b16 %v880, %v874
    %v1217 = vpack.c.b16 %v881, %v875
    %v1218 = vpack.c.b16 %v882, %v876
    %v1219 = vpack.c.b16 %v889, %v883
    %v1220 = vpack.c.b16 %v890, %v884
    %v1221 = vpack.c.b16 %v891, %v885
    %v1222 = vpack.c.b16 %v892, %v886
    %v1223 = vpack.c.b16 %v893, %v887
    %v1224 = vpack.c.b16 %v894, %v888
    %v1225 = vpack.c.b16 %v901, %v895
    %v1226 = vpack.c.b16 %v902, %v896
    %v1227 = vpack.c.b16 %v903, %v897
    %v1228 = vpack.c.b16 %v904, %v898
    %v1229 = vpack.c.b16 %v905, %v899
    %v1230 = vpack.c.b16 %v906, %v900
    %v1231 = vpack.c.b16 %v913, %v907
    %v1232 = vpack.c.b16 %v914, %v908
    %v1233 = vpack.c.b16 %v915, %v909
    %v1234 = vpack.c.b16 %v916, %v910
    %v1235 = vpack.c.b16 %v917, %v911
    %v1236 = vpack.c.b16 %v918, %v912
    %v1237 = vpack.c.b16 %v925, %v919
    %v1238 = vpack.c.b16 %v926, %v920
    %v1239 = vpack.c.b16 %v927, %v921
    %v1240 = vpack.c.b16 %v928, %v922
    %v1241 = vpack.c.b16 %v929, %v923
    %v1242 = vpack.c.b16 %v930, %v924
    %v1243 = vpack.c.b16 %v937, %v931
    %v1244 = vpack.c.b16 %v938, %v932
    %v1245 = vpack.c.b16 %v939, %v933
    %v1246 = vpack.c.b16 %v940, %v934
    %v1247 = vpack.c.b16 %v941, %v935
    %v1248 = vpack.c.b16 %v942, %v936
    %v1249 = vpack.c.b16 %v949, %v943
    %v1250 = vpack.c.b16 %v950, %v944
    %v1251 = vpack.c.b16 %v951, %v945
    %v1252 = vpack.c.b16 %v952, %v946
    %v1253 = vpack.c.b16 %v953, %v947
    %v1254 = vpack.c.b16 %v954, %v948
    %v1255 = vpack.c.b16 %v961, %v955
    %v1256 = vpack.c.b16 %v962, %v956
    %v1257 = vpack.c.b16 %v963, %v957
    %v1258 = vpack.c.b16 %v964, %v958
    %v1259 = vpack.c.b16 %v965, %v959
    %v1260 = vpack.c.b16 %v966, %v960
    %v1261 = vpack.c.b16 %v973, %v967
    %v1262 = vpack.c.b16 %v974, %v968
    %v1263 = vpack.c.b16 %v975, %v969
    %v1264 = vpack.c.b16 %v976, %v970
    %v1265 = vpack.c.b16 %v977, %v971
    %v1266 = vpack.c.b16 %v978, %v972
    %v1267 = vpack.c.b16 %v985, %v979
    %v1268 = vpack.c.b16 %v986, %v980
    %v1269 = vpack.c.b16 %v987, %v981
    %v1270 = vpack.c.b16 %v988, %v982
    %v1271 = vpack.c.b16 %v989, %v983
    %v1272 = vpack.c.b16 %v990, %v984
    %v1273 = vpack.c.b16 %v997, %v991
    %v1274 = vpack.c.b16 %v998, %v992
    %v1275 = vpack.c.b16 %v999, %v993
    %v1276 = vpack.c.b16 %v1000, %v994
    %v1277 = vpack.c.b16 %v1001, %v995
    %v1278 = vpack.c.b16 %v1002, %v996
    %v1279 = vpack.c.b16 %v1009, %v1003
    %v1280 = vpack.c.b16 %v1010, %v1004
    %v1281 = vpack.c.b16 %v1011, %v1005
    %v1282 = vpack.c.b16 %v1012, %v1006
    %v1283 = vpack.c.b16 %v1013, %v1007
    %v1284 = vpack.c.b16 %v1014, %v1008
    %v1285 = vpack.c.b16 %v1021, %v1015
    %v1286 = vpack.c.b16 %v1022, %v1016
    %v1287 = vpack.c.b16 %v1023, %v1017
    %v1288 = vpack.c.b16 %v1024, %v1018
    %v1289 = vpack.c.b16 %v1025, %v1019
    %v1290 = vpack.c.b16 %v1026, %v1020
    %v1291 = vpack.c.b16 %v1033, %v1027
    %v1292 = vpack.c.b16 %v1034, %v1028
    %v1293 = vpack.c.b16 %v1035, %v1029
    %v1294 = vpack.c.b16 %v1036, %v1030
    %v1295 = vpack.c.b16 %v1037, %v1031
    %v1296 = vpack.c.b16 %v1038, %v1032
    %v1297 = vpack.c.b16 %v1045, %v1039
    %v1298 = vpack.c.b16 %v1046, %v1040
    %v1299 = vpack.c.b16 %v1047, %v1041
    %v1300 = vpack.c.b16 %v1048, %v1042
    %v1301 = vpack.c.b16 %v1049, %v1043
    %v1302 = vpack.c.b16 %v1050, %v1044
    %v1303 = vpack.c.b16 %v1057, %v1051
    %v1304 = vpack.c.b16 %v1058, %v1052
    %v1305 = vpack.c.b16 %v1059, %v1053
    %v1306 = vpack.c.b16 %v1060, %v1054
    %v1307 = vpack.c.b16 %v1061, %v1055
    %v1308 = vpack.c.b16 %v1062, %v1056
    %v1309 = vpack.c.b16 %v1069, %v1063
    %v1310 = vpack.c.b16 %v1070, %v1064
    %v1311 = vpack.c.b16 %v1071, %v1065
    %v1312 = vpack.c.b16 %v1072, %v1066
    %v1313 = vpack.c.b16 %v1073, %v1067
    %v1314 = vpack.c.b16 %v1074, %v1068
    %1555 = vmatpush.bf16.msra.mxu0 %v1117
    %1556 = vmatpush.bf16.msra.mxu0 %v1111
    %1557 = vmatpush.bf16.msra.mxu0 %v1105
    %1558 = vmatpush.bf16.msra.mxu0 %v1099
    %1559 = vmatpush.bf16.msra.mxu0 %v1093
    %1560 = vmatpush.bf16.msra.mxu0 %v1087
    %1561 = vmatpush.bf16.msra.mxu0 %v1081
    %1562 = vmatpush.bf16.msra.mxu0 %v1075
    %1563 = vmatmul.bf16.gmra.mxu0 %v335
    %v1564 = vpop.f32.mrf.mxu0
    %v1565 = vadd.f32 0.0, %v1564
    %v1566 = vpop.f32.mrf.mxu0
    %v1567 = vadd.f32 0.0, %v1566
    %1568 = vmatmul.bf16.gmra.mxu0 %v340
    %v1569 = vpop.f32.mrf.mxu0
    %v1570 = vadd.f32 0.0, %v1569
    %v1571 = vpop.f32.mrf.mxu0
    %1572 = vdwg.mxu0
    %1573 = vmatpush.bf16.msra.mxu0 %v1165
    %1574 = vmatpush.bf16.msra.mxu0 %v1159
    %1575 = vmatpush.bf16.msra.mxu0 %v1153
    %1576 = vmatpush.bf16.msra.mxu0 %v1147
    %1577 = vmatpush.bf16.msra.mxu0 %v1141
    %1578 = vmatpush.bf16.msra.mxu0 %v1135
    %1579 = vmatpush.bf16.msra.mxu0 %v1129
    %1580 = vmatpush.bf16.msra.mxu0 %v1123
    %1581 = vmatmul.bf16.gmra.mxu0 %v336
    %v1582 = vpop.f32.mrf.mxu0
    %v1583 = vadd.f32 %v1565, %v1582
    %v1584 = vpop.f32.mrf.mxu0
    %v1585 = vadd.f32 %v1567, %v1584
    %1586 = vmatmul.bf16.gmra.mxu0 %v341
    %v1587 = vpop.f32.mrf.mxu0
    %v1588 = vadd.f32 %v1570, %v1587
    %v1589 = vpop.f32.mrf.mxu0
    %1590 = vdwg.mxu0
    %1591 = vmatpush.bf16.msra.mxu0 %v1213
    %1592 = vmatpush.bf16.msra.mxu0 %v1207
    %1593 = vmatpush.bf16.msra.mxu0 %v1201
    %1594 = vmatpush.bf16.msra.mxu0 %v1195
    %1595 = vmatpush.bf16.msra.mxu0 %v1189
    %1596 = vmatpush.bf16.msra.mxu0 %v1183
    %1597 = vmatpush.bf16.msra.mxu0 %v1177
    %1598 = vmatpush.bf16.msra.mxu0 %v1171
    %1599 = vmatmul.bf16.gmra.mxu0 %v337
    %v1600 = vpop.f32.mrf.mxu0
    %v1601 = vadd.f32 %v1583, %v1600
    %v1602 = vpop.f32.mrf.mxu0
    %v1603 = vadd.f32 %v1585, %v1602
    %1604 = vmatmul.bf16.gmra.mxu0 %v342
    %v1605 = vpop.f32.mrf.mxu0
    %v1606 = vadd.f32 %v1588, %v1605
    %v1607 = vpop.f32.mrf.mxu0
    %1608 = vdwg.mxu0
    %1609 = vmatpush.bf16.msra.mxu0 %v1261
    %1610 = vmatpush.bf16.msra.mxu0 %v1255
    %1611 = vmatpush.bf16.msra.mxu0 %v1249
    %1612 = vmatpush.bf16.msra.mxu0 %v1243
    %1613 = vmatpush.bf16.msra.mxu0 %v1237
    %1614 = vmatpush.bf16.msra.mxu0 %v1231
    %1615 = vmatpush.bf16.msra.mxu0 %v1225
    %1616 = vmatpush.bf16.msra.mxu0 %v1219
    %1617 = vmatmul.bf16.gmra.mxu0 %v338
    %v1618 = vpop.f32.mrf.mxu0
    %v1619 = vadd.f32 %v1601, %v1618
    %v1620 = vpop.f32.mrf.mxu0
    %v1621 = vadd.f32 %v1603, %v1620
    %1622 = vmatmul.bf16.gmra.mxu0 %v343
    %v1623 = vpop.f32.mrf.mxu0
    %v1624 = vadd.f32 %v1606, %v1623
    %v1625 = vpop.f32.mrf.mxu0
    %1626 = vdwg.mxu0
    %1627 = vmatpush.bf16.msra.mxu0 %v1309
    %1628 = vmatpush.bf16.msra.mxu0 %v1303
    %1629 = vmatpush.bf16.msra.mxu0 %v1297
    %1630 = vmatpush.bf16.msra.mxu0 %v1291
    %1631 = vmatpush.bf16.msra.mxu0 %v1285
    %1632 = vmatpush.bf16.msra.mxu0 %v1279
    %1633 = vmatpush.bf16.msra.mxu0 %v1273
    %1634 = vmatpush.bf16.msra.mxu0 %v1267
    %1635 = vmatmul.bf16.gmra.mxu0 %v339
    %v1636 = vpop.f32.mrf.mxu0
    %v1637 = vadd.f32 %v1619, %v1636
    %v1638 = vpop.f32.mrf.mxu0
    %v1639 = vadd.f32 %v1621, %v1638
    %1640 = vmatmul.bf16.gmra.mxu0 %v344
    %v1641 = vpop.f32.mrf.mxu0
    %v1642 = vadd.f32 %v1624, %v1641
    %v1643 = vpop.f32.mrf.mxu0
    %1644 = vdwg.mxu0
    %1645 = vmatpush.bf16.msra.mxu0 %v1118
    %1646 = vmatpush.bf16.msra.mxu0 %v1112
    %1647 = vmatpush.bf16.msra.mxu0 %v1106
    %1648 = vmatpush.bf16.msra.mxu0 %v1100
    %1649 = vmatpush.bf16.msra.mxu0 %v1094
    %1650 = vmatpush.bf16.msra.mxu0 %v1088
    %1651 = vmatpush.bf16.msra.mxu0 %v1082
    %1652 = vmatpush.bf16.msra.mxu0 %v1076
    %1653 = vmatmul.bf16.gmra.mxu0 %v335
    %v1654 = vpop.f32.mrf.mxu0
    %v1655 = vadd.f32 0.0, %v1654
    %v1656 = vpop.f32.mrf.mxu0
    %v1657 = vadd.f32 0.0, %v1656
    %1658 = vmatmul.bf16.gmra.mxu0 %v340
    %v1659 = vpop.f32.mrf.mxu0
    %v1660 = vadd.f32 0.0, %v1659
    %v1661 = vpop.f32.mrf.mxu0
    %1662 = vdwg.mxu0
    %1663 = vmatpush.bf16.msra.mxu0 %v1166
    %1664 = vmatpush.bf16.msra.mxu0 %v1160
    %1665 = vmatpush.bf16.msra.mxu0 %v1154
    %1666 = vmatpush.bf16.msra.mxu0 %v1148
    %1667 = vmatpush.bf16.msra.mxu0 %v1142
    %1668 = vmatpush.bf16.msra.mxu0 %v1136
    %1669 = vmatpush.bf16.msra.mxu0 %v1130
    %1670 = vmatpush.bf16.msra.mxu0 %v1124
    %1671 = vmatmul.bf16.gmra.mxu0 %v336
    %v1672 = vpop.f32.mrf.mxu0
    %v1673 = vadd.f32 %v1655, %v1672
    %v1674 = vpop.f32.mrf.mxu0
    %v1675 = vadd.f32 %v1657, %v1674
    %1676 = vmatmul.bf16.gmra.mxu0 %v341
    %v1677 = vpop.f32.mrf.mxu0
    %v1678 = vadd.f32 %v1660, %v1677
    %v1679 = vpop.f32.mrf.mxu0
    %1680 = vdwg.mxu0
    %1681 = vmatpush.bf16.msra.mxu0 %v1214
    %1682 = vmatpush.bf16.msra.mxu0 %v1208
    %1683 = vmatpush.bf16.msra.mxu0 %v1202
    %1684 = vmatpush.bf16.msra.mxu0 %v1196
    %1685 = vmatpush.bf16.msra.mxu0 %v1190
    %1686 = vmatpush.bf16.msra.mxu0 %v1184
    %1687 = vmatpush.bf16.msra.mxu0 %v1178
    %1688 = vmatpush.bf16.msra.mxu0 %v1172
    %1689 = vmatmul.bf16.gmra.mxu0 %v337
    %v1690 = vpop.f32.mrf.mxu0
    %v1691 = vadd.f32 %v1673, %v1690
    %v1692 = vpop.f32.mrf.mxu0
    %v1693 = vadd.f32 %v1675, %v1692
    %1694 = vmatmul.bf16.gmra.mxu0 %v342
    %v1695 = vpop.f32.mrf.mxu0
    %v1696 = vadd.f32 %v1678, %v1695
    %v1697 = vpop.f32.mrf.mxu0
    %1698 = vdwg.mxu0
    %1699 = vmatpush.bf16.msra.mxu0 %v1262
    %1700 = vmatpush.bf16.msra.mxu0 %v1256
    %1701 = vmatpush.bf16.msra.mxu0 %v1250
    %1702 = vmatpush.bf16.msra.mxu0 %v1244
    %1703 = vmatpush.bf16.msra.mxu0 %v1238
    %1704 = vmatpush.bf16.msra.mxu0 %v1232
    %1705 = vmatpush.bf16.msra.mxu0 %v1226
    %1706 = vmatpush.bf16.msra.mxu0 %v1220
    %1707 = vmatmul.bf16.gmra.mxu0 %v338
    %v1708 = vpop.f32.mrf.mxu0
    %v1709 = vadd.f32 %v1691, %v1708
    %v1710 = vpop.f32.mrf.mxu0
    %v1711 = vadd.f32 %v1693, %v1710
    %1712 = vmatmul.bf16.gmra.mxu0 %v343
    %v1713 = vpop.f32.mrf.mxu0
    %v1714 = vadd.f32 %v1696, %v1713
    %v1715 = vpop.f32.mrf.mxu0
    %1716 = vdwg.mxu0
    %1717 = vmatpush.bf16.msra.mxu0 %v1310
    %1718 = vmatpush.bf16.msra.mxu0 %v1304
    %1719 = vmatpush.bf16.msra.mxu0 %v1298
    %1720 = vmatpush.bf16.msra.mxu0 %v1292
    %1721 = vmatpush.bf16.msra.mxu0 %v1286
    %1722 = vmatpush.bf16.msra.mxu0 %v1280
    %1723 = vmatpush.bf16.msra.mxu0 %v1274
    %1724 = vmatpush.bf16.msra.mxu0 %v1268
    %1725 = vmatmul.bf16.gmra.mxu0 %v339
    %v1726 = vpop.f32.mrf.mxu0
    %v1727 = vadd.f32 %v1709, %v1726
    %v1728 = vpop.f32.mrf.mxu0
    %v1729 = vadd.f32 %v1711, %v1728
    %1730 = vmatmul.bf16.gmra.mxu0 %v344
    %v1731 = vpop.f32.mrf.mxu0
    %v1732 = vadd.f32 %v1714, %v1731
    %v1733 = vpop.f32.mrf.mxu0
    %1734 = vdwg.mxu0
    %1735 = vmatpush.bf16.msra.mxu0 %v1119
    %1736 = vmatpush.bf16.msra.mxu0 %v1113
    %1737 = vmatpush.bf16.msra.mxu0 %v1107
    %1738 = vmatpush.bf16.msra.mxu0 %v1101
    %1739 = vmatpush.bf16.msra.mxu0 %v1095
    %1740 = vmatpush.bf16.msra.mxu0 %v1089
    %1741 = vmatpush.bf16.msra.mxu0 %v1083
    %1742 = vmatpush.bf16.msra.mxu0 %v1077
    %1743 = vmatmul.bf16.gmra.mxu0 %v335
    %v1744 = vpop.f32.mrf.mxu0
    %v1745 = vadd.f32 0.0, %v1744
    %v1746 = vpop.f32.mrf.mxu0
    %v1747 = vadd.f32 0.0, %v1746
    %1748 = vmatmul.bf16.gmra.mxu0 %v340
    %v1749 = vpop.f32.mrf.mxu0
    %v1750 = vadd.f32 0.0, %v1749
    %v1751 = vpop.f32.mrf.mxu0
    %1752 = vdwg.mxu0
    %1753 = vmatpush.bf16.msra.mxu0 %v1167
    %1754 = vmatpush.bf16.msra.mxu0 %v1161
    %1755 = vmatpush.bf16.msra.mxu0 %v1155
    %1756 = vmatpush.bf16.msra.mxu0 %v1149
    %1757 = vmatpush.bf16.msra.mxu0 %v1143
    %1758 = vmatpush.bf16.msra.mxu0 %v1137
    %1759 = vmatpush.bf16.msra.mxu0 %v1131
    %1760 = vmatpush.bf16.msra.mxu0 %v1125
    %1761 = vmatmul.bf16.gmra.mxu0 %v336
    %v1762 = vpop.f32.mrf.mxu0
    %v1763 = vadd.f32 %v1745, %v1762
    %v1764 = vpop.f32.mrf.mxu0
    %v1765 = vadd.f32 %v1747, %v1764
    %1766 = vmatmul.bf16.gmra.mxu0 %v341
    %v1767 = vpop.f32.mrf.mxu0
    %v1768 = vadd.f32 %v1750, %v1767
    %v1769 = vpop.f32.mrf.mxu0
    %1770 = vdwg.mxu0
    %1771 = vmatpush.bf16.msra.mxu0 %v1215
    %1772 = vmatpush.bf16.msra.mxu0 %v1209
    %1773 = vmatpush.bf16.msra.mxu0 %v1203
    %1774 = vmatpush.bf16.msra.mxu0 %v1197
    %1775 = vmatpush.bf16.msra.mxu0 %v1191
    %1776 = vmatpush.bf16.msra.mxu0 %v1185
    %1777 = vmatpush.bf16.msra.mxu0 %v1179
    %1778 = vmatpush.bf16.msra.mxu0 %v1173
    %1779 = vmatmul.bf16.gmra.mxu0 %v337
    %v1780 = vpop.f32.mrf.mxu0
    %v1781 = vadd.f32 %v1763, %v1780
    %v1782 = vpop.f32.mrf.mxu0
    %v1783 = vadd.f32 %v1765, %v1782
    %1784 = vmatmul.bf16.gmra.mxu0 %v342
    %v1785 = vpop.f32.mrf.mxu0
    %v1786 = vadd.f32 %v1768, %v1785
    %v1787 = vpop.f32.mrf.mxu0
    %1788 = vdwg.mxu0
    %1789 = vmatpush.bf16.msra.mxu0 %v1263
    %1790 = vmatpush.bf16.msra.mxu0 %v1257
    %1791 = vmatpush.bf16.msra.mxu0 %v1251
    %1792 = vmatpush.bf16.msra.mxu0 %v1245
    %1793 = vmatpush.bf16.msra.mxu0 %v1239
    %1794 = vmatpush.bf16.msra.mxu0 %v1233
    %1795 = vmatpush.bf16.msra.mxu0 %v1227
    %1796 = vmatpush.bf16.msra.mxu0 %v1221
    %1797 = vmatmul.bf16.gmra.mxu0 %v338
    %v1798 = vpop.f32.mrf.mxu0
    %v1799 = vadd.f32 %v1781, %v1798
    %v1800 = vpop.f32.mrf.mxu0
    %v1801 = vadd.f32 %v1783, %v1800
    %1802 = vmatmul.bf16.gmra.mxu0 %v343
    %v1803 = vpop.f32.mrf.mxu0
    %v1804 = vadd.f32 %v1786, %v1803
    %v1805 = vpop.f32.mrf.mxu0
    %1806 = vdwg.mxu0
    %1807 = vmatpush.bf16.msra.mxu0 %v1311
    %1808 = vmatpush.bf16.msra.mxu0 %v1305
    %1809 = vmatpush.bf16.msra.mxu0 %v1299
    %1810 = vmatpush.bf16.msra.mxu0 %v1293
    %1811 = vmatpush.bf16.msra.mxu0 %v1287
    %1812 = vmatpush.bf16.msra.mxu0 %v1281
    %1813 = vmatpush.bf16.msra.mxu0 %v1275
    %1814 = vmatpush.bf16.msra.mxu0 %v1269
    %1815 = vmatmul.bf16.gmra.mxu0 %v339
    %v1816 = vpop.f32.mrf.mxu0
    %v1817 = vadd.f32 %v1799, %v1816
    %v1818 = vpop.f32.mrf.mxu0
    %v1819 = vadd.f32 %v1801, %v1818
    %1820 = vmatmul.bf16.gmra.mxu0 %v344
    %v1821 = vpop.f32.mrf.mxu0
    %v1822 = vadd.f32 %v1804, %v1821
    %v1823 = vpop.f32.mrf.mxu0
    %1824 = vdwg.mxu0
    %1825 = vmatpush.bf16.msra.mxu0 %v1120
    %1826 = vmatpush.bf16.msra.mxu0 %v1114
    %1827 = vmatpush.bf16.msra.mxu0 %v1108
    %1828 = vmatpush.bf16.msra.mxu0 %v1102
    %1829 = vmatpush.bf16.msra.mxu0 %v1096
    %1830 = vmatpush.bf16.msra.mxu0 %v1090
    %1831 = vmatpush.bf16.msra.mxu0 %v1084
    %1832 = vmatpush.bf16.msra.mxu0 %v1078
    %1833 = vmatmul.bf16.gmra.mxu0 %v335
    %v1834 = vpop.f32.mrf.mxu0
    %v1835 = vadd.f32 0.0, %v1834
    %v1836 = vpop.f32.mrf.mxu0
    %v1837 = vadd.f32 0.0, %v1836
    %1838 = vmatmul.bf16.gmra.mxu0 %v340
    %v1839 = vpop.f32.mrf.mxu0
    %v1840 = vadd.f32 0.0, %v1839
    %v1841 = vpop.f32.mrf.mxu0
    %1842 = vdwg.mxu0
    %1843 = vmatpush.bf16.msra.mxu0 %v1168
    %1844 = vmatpush.bf16.msra.mxu0 %v1162
    %1845 = vmatpush.bf16.msra.mxu0 %v1156
    %1846 = vmatpush.bf16.msra.mxu0 %v1150
    %1847 = vmatpush.bf16.msra.mxu0 %v1144
    %1848 = vmatpush.bf16.msra.mxu0 %v1138
    %1849 = vmatpush.bf16.msra.mxu0 %v1132
    %1850 = vmatpush.bf16.msra.mxu0 %v1126
    %1851 = vmatmul.bf16.gmra.mxu0 %v336
    %v1852 = vpop.f32.mrf.mxu0
    %v1853 = vadd.f32 %v1835, %v1852
    %v1854 = vpop.f32.mrf.mxu0
    %v1855 = vadd.f32 %v1837, %v1854
    %1856 = vmatmul.bf16.gmra.mxu0 %v341
    %v1857 = vpop.f32.mrf.mxu0
    %v1858 = vadd.f32 %v1840, %v1857
    %v1859 = vpop.f32.mrf.mxu0
    %1860 = vdwg.mxu0
    %1861 = vmatpush.bf16.msra.mxu0 %v1216
    %1862 = vmatpush.bf16.msra.mxu0 %v1210
    %1863 = vmatpush.bf16.msra.mxu0 %v1204
    %1864 = vmatpush.bf16.msra.mxu0 %v1198
    %1865 = vmatpush.bf16.msra.mxu0 %v1192
    %1866 = vmatpush.bf16.msra.mxu0 %v1186
    %1867 = vmatpush.bf16.msra.mxu0 %v1180
    %1868 = vmatpush.bf16.msra.mxu0 %v1174
    %1869 = vmatmul.bf16.gmra.mxu0 %v337
    %v1870 = vpop.f32.mrf.mxu0
    %v1871 = vadd.f32 %v1853, %v1870
    %v1872 = vpop.f32.mrf.mxu0
    %v1873 = vadd.f32 %v1855, %v1872
    %1874 = vmatmul.bf16.gmra.mxu0 %v342
    %v1875 = vpop.f32.mrf.mxu0
    %v1876 = vadd.f32 %v1858, %v1875
    %v1877 = vpop.f32.mrf.mxu0
    %1878 = vdwg.mxu0
    %1879 = vmatpush.bf16.msra.mxu0 %v1264
    %1880 = vmatpush.bf16.msra.mxu0 %v1258
    %1881 = vmatpush.bf16.msra.mxu0 %v1252
    %1882 = vmatpush.bf16.msra.mxu0 %v1246
    %1883 = vmatpush.bf16.msra.mxu0 %v1240
    %1884 = vmatpush.bf16.msra.mxu0 %v1234
    %1885 = vmatpush.bf16.msra.mxu0 %v1228
    %1886 = vmatpush.bf16.msra.mxu0 %v1222
    %1887 = vmatmul.bf16.gmra.mxu0 %v338
    %v1888 = vpop.f32.mrf.mxu0
    %v1889 = vadd.f32 %v1871, %v1888
    %v1890 = vpop.f32.mrf.mxu0
    %v1891 = vadd.f32 %v1873, %v1890
    %1892 = vmatmul.bf16.gmra.mxu0 %v343
    %v1893 = vpop.f32.mrf.mxu0
    %v1894 = vadd.f32 %v1876, %v1893
    %v1895 = vpop.f32.mrf.mxu0
    %1896 = vdwg.mxu0
    %1897 = vmatpush.bf16.msra.mxu0 %v1312
    %1898 = vmatpush.bf16.msra.mxu0 %v1306
    %1899 = vmatpush.bf16.msra.mxu0 %v1300
    %1900 = vmatpush.bf16.msra.mxu0 %v1294
    %1901 = vmatpush.bf16.msra.mxu0 %v1288
    %1902 = vmatpush.bf16.msra.mxu0 %v1282
    %1903 = vmatpush.bf16.msra.mxu0 %v1276
    %1904 = vmatpush.bf16.msra.mxu0 %v1270
    %1905 = vmatmul.bf16.gmra.mxu0 %v339
    %v1906 = vpop.f32.mrf.mxu0
    %v1907 = vadd.f32 %v1889, %v1906
    %v1908 = vpop.f32.mrf.mxu0
    %v1909 = vadd.f32 %v1891, %v1908
    %1910 = vmatmul.bf16.gmra.mxu0 %v344
    %v1911 = vpop.f32.mrf.mxu0
    %v1912 = vadd.f32 %v1894, %v1911
    %v1913 = vpop.f32.mrf.mxu0
    %1914 = vdwg.mxu0
    %1915 = vmatpush.bf16.msra.mxu0 %v1121
    %1916 = vmatpush.bf16.msra.mxu0 %v1115
    %1917 = vmatpush.bf16.msra.mxu0 %v1109
    %1918 = vmatpush.bf16.msra.mxu0 %v1103
    %1919 = vmatpush.bf16.msra.mxu0 %v1097
    %1920 = vmatpush.bf16.msra.mxu0 %v1091
    %1921 = vmatpush.bf16.msra.mxu0 %v1085
    %1922 = vmatpush.bf16.msra.mxu0 %v1079
    %1923 = vmatmul.bf16.gmra.mxu0 %v335
    %v1924 = vpop.f32.mrf.mxu0
    %v1925 = vadd.f32 0.0, %v1924
    %v1926 = vpop.f32.mrf.mxu0
    %v1927 = vadd.f32 0.0, %v1926
    %1928 = vmatmul.bf16.gmra.mxu0 %v340
    %v1929 = vpop.f32.mrf.mxu0
    %v1930 = vadd.f32 0.0, %v1929
    %v1931 = vpop.f32.mrf.mxu0
    %1932 = vdwg.mxu0
    %1933 = vmatpush.bf16.msra.mxu0 %v1169
    %1934 = vmatpush.bf16.msra.mxu0 %v1163
    %1935 = vmatpush.bf16.msra.mxu0 %v1157
    %1936 = vmatpush.bf16.msra.mxu0 %v1151
    %1937 = vmatpush.bf16.msra.mxu0 %v1145
    %1938 = vmatpush.bf16.msra.mxu0 %v1139
    %1939 = vmatpush.bf16.msra.mxu0 %v1133
    %1940 = vmatpush.bf16.msra.mxu0 %v1127
    %1941 = vmatmul.bf16.gmra.mxu0 %v336
    %v1942 = vpop.f32.mrf.mxu0
    %v1943 = vadd.f32 %v1925, %v1942
    %v1944 = vpop.f32.mrf.mxu0
    %v1945 = vadd.f32 %v1927, %v1944
    %1946 = vmatmul.bf16.gmra.mxu0 %v341
    %v1947 = vpop.f32.mrf.mxu0
    %v1948 = vadd.f32 %v1930, %v1947
    %v1949 = vpop.f32.mrf.mxu0
    %1950 = vdwg.mxu0
    %1951 = vmatpush.bf16.msra.mxu0 %v1217
    %1952 = vmatpush.bf16.msra.mxu0 %v1211
    %1953 = vmatpush.bf16.msra.mxu0 %v1205
    %1954 = vmatpush.bf16.msra.mxu0 %v1199
    %1955 = vmatpush.bf16.msra.mxu0 %v1193
    %1956 = vmatpush.bf16.msra.mxu0 %v1187
    %1957 = vmatpush.bf16.msra.mxu0 %v1181
    %1958 = vmatpush.bf16.msra.mxu0 %v1175
    %1959 = vmatmul.bf16.gmra.mxu0 %v337
    %v1960 = vpop.f32.mrf.mxu0
    %v1961 = vadd.f32 %v1943, %v1960
    %v1962 = vpop.f32.mrf.mxu0
    %v1963 = vadd.f32 %v1945, %v1962
    %1964 = vmatmul.bf16.gmra.mxu0 %v342
    %v1965 = vpop.f32.mrf.mxu0
    %v1966 = vadd.f32 %v1948, %v1965
    %v1967 = vpop.f32.mrf.mxu0
    %1968 = vdwg.mxu0
    %1969 = vmatpush.bf16.msra.mxu0 %v1265
    %1970 = vmatpush.bf16.msra.mxu0 %v1259
    %1971 = vmatpush.bf16.msra.mxu0 %v1253
    %1972 = vmatpush.bf16.msra.mxu0 %v1247
    %1973 = vmatpush.bf16.msra.mxu0 %v1241
    %1974 = vmatpush.bf16.msra.mxu0 %v1235
    %1975 = vmatpush.bf16.msra.mxu0 %v1229
    %1976 = vmatpush.bf16.msra.mxu0 %v1223
    %1977 = vmatmul.bf16.gmra.mxu0 %v338
    %v1978 = vpop.f32.mrf.mxu0
    %v1979 = vadd.f32 %v1961, %v1978
    %v1980 = vpop.f32.mrf.mxu0
    %v1981 = vadd.f32 %v1963, %v1980
    %1982 = vmatmul.bf16.gmra.mxu0 %v343
    %v1983 = vpop.f32.mrf.mxu0
    %v1984 = vadd.f32 %v1966, %v1983
    %v1985 = vpop.f32.mrf.mxu0
    %1986 = vdwg.mxu0
    %1987 = vmatpush.bf16.msra.mxu0 %v1313
    %1988 = vmatpush.bf16.msra.mxu0 %v1307
    %1989 = vmatpush.bf16.msra.mxu0 %v1301
    %1990 = vmatpush.bf16.msra.mxu0 %v1295
    %1991 = vmatpush.bf16.msra.mxu0 %v1289
    %1992 = vmatpush.bf16.msra.mxu0 %v1283
    %1993 = vmatpush.bf16.msra.mxu0 %v1277
    %1994 = vmatpush.bf16.msra.mxu0 %v1271
    %1995 = vmatmul.bf16.gmra.mxu0 %v339
    %v1996 = vpop.f32.mrf.mxu0
    %v1997 = vadd.f32 %v1979, %v1996
    %v1998 = vpop.f32.mrf.mxu0
    %v1999 = vadd.f32 %v1981, %v1998
    %2000 = vmatmul.bf16.gmra.mxu0 %v344
    %v2001 = vpop.f32.mrf.mxu0
    %v2002 = vadd.f32 %v1984, %v2001
    %v2003 = vpop.f32.mrf.mxu0
    %2004 = vdwg.mxu0
    %2005 = vmatpush.bf16.msra.mxu0 %v1122
    %2006 = vmatpush.bf16.msra.mxu0 %v1116
    %2007 = vmatpush.bf16.msra.mxu0 %v1110
    %2008 = vmatpush.bf16.msra.mxu0 %v1104
    %2009 = vmatpush.bf16.msra.mxu0 %v1098
    %2010 = vmatpush.bf16.msra.mxu0 %v1092
    %2011 = vmatpush.bf16.msra.mxu0 %v1086
    %2012 = vmatpush.bf16.msra.mxu0 %v1080
    %2013 = vmatmul.bf16.gmra.mxu0 %v335
    %v2014 = vpop.f32.mrf.mxu0
    %v2015 = vadd.f32 0.0, %v2014
    %v2016 = vpop.f32.mrf.mxu0
    %v2017 = vadd.f32 0.0, %v2016
    %2018 = vmatmul.bf16.gmra.mxu0 %v340
    %v2019 = vpop.f32.mrf.mxu0
    %v2020 = vadd.f32 0.0, %v2019
    %v2021 = vpop.f32.mrf.mxu0
    %2022 = vdwg.mxu0
    %2023 = vmatpush.bf16.msra.mxu0 %v1170
    %2024 = vmatpush.bf16.msra.mxu0 %v1164
    %2025 = vmatpush.bf16.msra.mxu0 %v1158
    %2026 = vmatpush.bf16.msra.mxu0 %v1152
    %2027 = vmatpush.bf16.msra.mxu0 %v1146
    %2028 = vmatpush.bf16.msra.mxu0 %v1140
    %2029 = vmatpush.bf16.msra.mxu0 %v1134
    %2030 = vmatpush.bf16.msra.mxu0 %v1128
    %2031 = vmatmul.bf16.gmra.mxu0 %v336
    %v2032 = vpop.f32.mrf.mxu0
    %v2033 = vadd.f32 %v2015, %v2032
    %v2034 = vpop.f32.mrf.mxu0
    %v2035 = vadd.f32 %v2017, %v2034
    %2036 = vmatmul.bf16.gmra.mxu0 %v341
    %v2037 = vpop.f32.mrf.mxu0
    %v2038 = vadd.f32 %v2020, %v2037
    %v2039 = vpop.f32.mrf.mxu0
    %2040 = vdwg.mxu0
    %2041 = vmatpush.bf16.msra.mxu0 %v1218
    %2042 = vmatpush.bf16.msra.mxu0 %v1212
    %2043 = vmatpush.bf16.msra.mxu0 %v1206
    %2044 = vmatpush.bf16.msra.mxu0 %v1200
    %2045 = vmatpush.bf16.msra.mxu0 %v1194
    %2046 = vmatpush.bf16.msra.mxu0 %v1188
    %2047 = vmatpush.bf16.msra.mxu0 %v1182
    %2048 = vmatpush.bf16.msra.mxu0 %v1176
    %2049 = vmatmul.bf16.gmra.mxu0 %v337
    %v2050 = vpop.f32.mrf.mxu0
    %v2051 = vadd.f32 %v2033, %v2050
    %v2052 = vpop.f32.mrf.mxu0
    %v2053 = vadd.f32 %v2035, %v2052
    %2054 = vmatmul.bf16.gmra.mxu0 %v342
    %v2055 = vpop.f32.mrf.mxu0
    %v2056 = vadd.f32 %v2038, %v2055
    %v2057 = vpop.f32.mrf.mxu0
    %2058 = vdwg.mxu0
    %2059 = vmatpush.bf16.msra.mxu0 %v1266
    %2060 = vmatpush.bf16.msra.mxu0 %v1260
    %2061 = vmatpush.bf16.msra.mxu0 %v1254
    %2062 = vmatpush.bf16.msra.mxu0 %v1248
    %2063 = vmatpush.bf16.msra.mxu0 %v1242
    %2064 = vmatpush.bf16.msra.mxu0 %v1236
    %2065 = vmatpush.bf16.msra.mxu0 %v1230
    %2066 = vmatpush.bf16.msra.mxu0 %v1224
    %2067 = vmatmul.bf16.gmra.mxu0 %v338
    %v2068 = vpop.f32.mrf.mxu0
    %v2069 = vadd.f32 %v2051, %v2068
    %v2070 = vpop.f32.mrf.mxu0
    %v2071 = vadd.f32 %v2053, %v2070
    %2072 = vmatmul.bf16.gmra.mxu0 %v343
    %v2073 = vpop.f32.mrf.mxu0
    %v2074 = vadd.f32 %v2056, %v2073
    %v2075 = vpop.f32.mrf.mxu0
    %2076 = vdwg.mxu0
    %2077 = vmatpush.bf16.msra.mxu0 %v1314
    %2078 = vmatpush.bf16.msra.mxu0 %v1308
    %2079 = vmatpush.bf16.msra.mxu0 %v1302
    %2080 = vmatpush.bf16.msra.mxu0 %v1296
    %2081 = vmatpush.bf16.msra.mxu0 %v1290
    %2082 = vmatpush.bf16.msra.mxu0 %v1284
    %2083 = vmatpush.bf16.msra.mxu0 %v1278
    %2084 = vmatpush.bf16.msra.mxu0 %v1272
    %2085 = vmatmul.bf16.gmra.mxu0 %v339
    %v2086 = vpop.f32.mrf.mxu0
    %v2087 = vadd.f32 %v2069, %v2086
    %v2088 = vpop.f32.mrf.mxu0
    %v2089 = vadd.f32 %v2071, %v2088
    %2090 = vmatmul.bf16.gmra.mxu0 %v344
    %v2091 = vpop.f32.mrf.mxu0
    %v2092 = vadd.f32 %v2074, %v2091
    %v2093 = vpop.f32.mrf.mxu0
    %2094 = vdwg.mxu0
    %v2095 = vmul.f32 %v1637, %v1637
    %v2096 = vmul.f32 %v1727, %v1727
    %v2097 = vmul.f32 %v1817, %v1817
    %v2098 = vmul.f32 %v1639, %v1639
    %v2099 = vmul.f32 %v1729, %v1729
    %v2100 = vmul.f32 %v1819, %v1819
    %v2101 = vmul.f32 %v1642, %v1642
    %v2102 = vmul.f32 %v1732, %v1732
    %v2103 = vmul.f32 %v1822, %v1822
    %v2104 = vmul.f32 %v1907, %v1907
    %v2105 = vmul.f32 %v1997, %v1997
    %v2106 = vmul.f32 %v2087, %v2087
    %v2107 = vmul.f32 %v1909, %v1909
    %v2108 = vmul.f32 %v1999, %v1999
    %v2109 = vmul.f32 %v2089, %v2089
    %v2110 = vmul.f32 %v1912, %v1912
    %v2111 = vmul.f32 %v2002, %v2002
    %v2112 = vmul.f32 %v2092, %v2092
    %v2113 = vadd.f32 %v2095, %v2104
    %v2114 = vadd.f32 %v2096, %v2105
    %v2115 = vadd.f32 %v2097, %v2106
    %v2116 = vadd.f32 %v2098, %v2107
    %v2117 = vadd.f32 %v2099, %v2108
    %v2118 = vadd.f32 %v2100, %v2109
    %v2119 = vadd.f32 %v2101, %v2110
    %v2120 = vadd.f32 %v2102, %v2111
    %v2121 = vadd.f32 %v2103, %v2112
    %v2122 = vld [vmem:[#allocation7] sm:$0xff]
    %v2123 = vld [vmem:[#allocation7 + $0x8] sm:$0xff]
    %v2124 = vld [vmem:[#allocation7 + $0x10] sm:$0xff]
    %v2125 = vld [vmem:[#allocation7 + $0x18] sm:$0xff]
    %v2126 = vld [vmem:[#allocation7 + $0x20] sm:$0xff]
    %v2127 = vld [vmem:[#allocation7 + $0x28] sm:$0xff]
    %v2128 = vld [vmem:[#allocation7 + $0x30] sm:$0xff]
    %v2129 = vld [vmem:[#allocation7 + $0x38] sm:$0xff]
    %v2130 = vld [vmem:[#allocation7 + $0x40] sm:$0xff]
    %v2131 = vld [vmem:[#allocation7 + $0x48] sm:$0xff]
    %v2132 = vld [vmem:[#allocation7 + $0x50] sm:$0xff]
    %v2133 = vld [vmem:[#allocation7 + $0x58] sm:$0xff]
    %v2134 = vld [vmem:[#allocation7 + $0x60] sm:$0xff]
    %v2135 = vld [vmem:[#allocation7 + $0x68] sm:$0xff]
    %v2136 = vld [vmem:[#allocation7 + $0x70] sm:$0xff]
    %v2137 = vld [vmem:[#allocation7 + $0x78] sm:$0xff]
    %v2138 = vld [vmem:[#allocation7 + $0x80] sm:$0xff]
    %v2139 = vld [vmem:[#allocation7 + $0x88] sm:$0xff]
    %v2140 = vld [vmem:[#allocation7 + $0x90] sm:$0xff]
    %v2141 = vld [vmem:[#allocation7 + $0x98] sm:$0xff]
    %v2142 = vld [vmem:[#allocation7 + $0xa0] sm:$0xff]
    %v2143 = vld [vmem:[#allocation7 + $0xa8] sm:$0xff]
    %v2144 = vld [vmem:[#allocation7 + $0xb0] sm:$0xff]
    %v2145 = vld [vmem:[#allocation7 + $0xb8] sm:$0xff]
    %v2146 = vld [vmem:[#allocation7 + $0xc0] sm:$0xff]
    %v2147 = vld [vmem:[#allocation7 + $0xc8] sm:$0xff]
    %v2148 = vld [vmem:[#allocation7 + $0xd0] sm:$0xff]
    %v2149 = vld [vmem:[#allocation7 + $0xd8] sm:$0xff]
    %v2150 = vld [vmem:[#allocation7 + $0xe0] sm:$0xff]
    %v2151 = vld [vmem:[#allocation7 + $0xe8] sm:$0xff]
    %v2152 = vld [vmem:[#allocation7 + $0xf0] sm:$0xff]
    %v2153 = vld [vmem:[#allocation7 + $0xf8] sm:$0xff]
    %v2154 = vld [vmem:[#allocation7 + $0x100] sm:$0xff]
    %v2155 = vld [vmem:[#allocation7 + $0x108] sm:$0xff]
    %v2156 = vld [vmem:[#allocation7 + $0x110] sm:$0xff]
    %v2157 = vld [vmem:[#allocation7 + $0x118] sm:$0xff]
    %v2158 = vld [vmem:[#allocation7 + $0x120] sm:$0xff]
    %v2159 = vld [vmem:[#allocation7 + $0x128] sm:$0xff]
    %v2160 = vld [vmem:[#allocation7 + $0x130] sm:$0xff]
    %v2161 = vld [vmem:[#allocation7 + $0x138] sm:$0xff]
    %v2162 = vld [vmem:[#allocation7 + $0x140] sm:$0xff]
    %v2163 = vld [vmem:[#allocation7 + $0x148] sm:$0xff]
    %v2164 = vld [vmem:[#allocation7 + $0x150] sm:$0xff]
    %v2165 = vld [vmem:[#allocation7 + $0x158] sm:$0xff]
    %v2166 = vld [vmem:[#allocation7 + $0x160] sm:$0xff]
    %v2167 = vld [vmem:[#allocation7 + $0x168] sm:$0xff]
    %v2168 = vld [vmem:[#allocation7 + $0x170] sm:$0xff]
    %v2169 = vld [vmem:[#allocation7 + $0x178] sm:$0xff]
    %2170 = vmatpush.msra.mxu0 %v2137
    %2171 = vmatpush.msra.mxu0 %v2136
    %2172 = vmatpush.msra.mxu0 %v2135
    %2173 = vmatpush.msra.mxu0 %v2134
    %2174 = vmatpush.msra.mxu0 %v2133
    %2175 = vmatpush.msra.mxu0 %v2132
    %2176 = vmatpush.msra.mxu0 %v2131
    %2177 = vmatpush.msra.mxu0 %v2130
    %2178 = vmatpush.msra.mxu0 %v2129
    %2179 = vmatpush.msra.mxu0 %v2128
    %2180 = vmatpush.msra.mxu0 %v2127
    %2181 = vmatpush.msra.mxu0 %v2126
    %2182 = vmatpush.msra.mxu0 %v2125
    %2183 = vmatpush.msra.mxu0 %v2124
    %2184 = vmatpush.msra.mxu0 %v2123
    %2185 = vmatpush.msra.mxu0 %v2122
    %2186 = vmatmul.f32.gmra.mxu0 %v2113
    %v2187 = vpop.f32.mrf.mxu0
    %v2188 = vadd.f32 0.0, %v2187
    %2189 = vmatmul.f32.gmra.mxu0 %v2116
    %v2190 = vpop.f32.mrf.mxu0
    %v2191 = vadd.f32 0.0, %v2190
    %2192 = vmatmul.f32.gmra.mxu0 %v2119
    %v2193 = vpop.f32.mrf.mxu0
    %v2194 = vadd.f32 0.0, %v2193
    %2195 = vdwg.mxu0
    %2196 = vmatpush.msra.mxu0 %v2153
    %2197 = vmatpush.msra.mxu0 %v2152
    %2198 = vmatpush.msra.mxu0 %v2151
    %2199 = vmatpush.msra.mxu0 %v2150
    %2200 = vmatpush.msra.mxu0 %v2149
    %2201 = vmatpush.msra.mxu0 %v2148
    %2202 = vmatpush.msra.mxu0 %v2147
    %2203 = vmatpush.msra.mxu0 %v2146
    %2204 = vmatpush.msra.mxu0 %v2145
    %2205 = vmatpush.msra.mxu0 %v2144
    %2206 = vmatpush.msra.mxu0 %v2143
    %2207 = vmatpush.msra.mxu0 %v2142
    %2208 = vmatpush.msra.mxu0 %v2141
    %2209 = vmatpush.msra.mxu0 %v2140
    %2210 = vmatpush.msra.mxu0 %v2139
    %2211 = vmatpush.msra.mxu0 %v2138
    %2212 = vmatmul.f32.gmra.mxu0 %v2114
    %v2213 = vpop.f32.mrf.mxu0
    %v2214 = vadd.f32 %v2188, %v2213
    %2215 = vmatmul.f32.gmra.mxu0 %v2117
    %v2216 = vpop.f32.mrf.mxu0
    %v2217 = vadd.f32 %v2191, %v2216
    %2218 = vmatmul.f32.gmra.mxu0 %v2120
    %v2219 = vpop.f32.mrf.mxu0
    %v2220 = vadd.f32 %v2194, %v2219
    %2221 = vdwg.mxu0
    %2222 = vmatpush.msra.mxu0 %v2169
    %2223 = vmatpush.msra.mxu0 %v2168
    %2224 = vmatpush.msra.mxu0 %v2167
    %2225 = vmatpush.msra.mxu0 %v2166
    %2226 = vmatpush.msra.mxu0 %v2165
    %2227 = vmatpush.msra.mxu0 %v2164
    %2228 = vmatpush.msra.mxu0 %v2163
    %2229 = vmatpush.msra.mxu0 %v2162
    %2230 = vmatpush.msra.mxu0 %v2161
    %2231 = vmatpush.msra.mxu0 %v2160
    %2232 = vmatpush.msra.mxu0 %v2159
    %2233 = vmatpush.msra.mxu0 %v2158
    %2234 = vmatpush.msra.mxu0 %v2157
    %2235 = vmatpush.msra.mxu0 %v2156
    %2236 = vmatpush.msra.mxu0 %v2155
    %2237 = vmatpush.msra.mxu0 %v2154
    %2238 = vmatmul.f32.gmra.mxu0 %v2115
    %v2239 = vpop.f32.mrf.mxu0
    %v2240 = vadd.f32 %v2214, %v2239
    %2241 = vmatmul.f32.gmra.mxu0 %v2118
    %v2242 = vpop.f32.mrf.mxu0
    %v2243 = vadd.f32 %v2217, %v2242
    %2244 = vmatmul.f32.gmra.mxu0 %v2121
    %v2245 = vpop.f32.mrf.mxu0
    %v2246 = vadd.f32 %v2220, %v2245
    %2247 = vdwg.mxu0
    %v2248 = vmax.f32 %v2240, 1e-10
    %v2249 = vmax.f32 %v2243, 1e-10
    %v2250 = vmax.f32 %v2246, 1e-10
    %v2251 = vlog2.pop %v2248
    %v2252 = vmul.f32 %v2251, 0.6931472
    %v2253 = vlog2.pop %v2249
    %v2254 = vmul.f32 %v2253, 0.6931472
    %v2255 = vlog2.pop %v2250
    %v2256 = vmul.f32 %v2255, 0.6931472
    %v2257 = vmul.f32 %v2252, 0.4342945
    %v2258 = vmul.f32 %v2254, 0.4342945
    %v2259 = vmul.f32 %v2256, 0.4342945
    %v2260 = vmul.f32 %v2257, 10.0
    %v2261 = vmul.f32 %v2258, 10.0
    %v2262 = vmul.f32 %v2259, 10.0
    %2263 = vst [vmem:[#allocation8] sm:$0xff] %v2260
    %2264 = vst [vmem:[#allocation8 + $0x8] sm:$0xff] %v2261
    %2265 = vst [vmem:[#allocation8 + $0x10] sm:$0x3] %v2262
    // Predicated region
    $region26: #{tpu_custom_call.1} parent=1 // pred_check
      _
    $region27: #{tpu_custom_call.1} parent=1 // pred_check_branch
      %2267 = sbr.rel (0) target = $region29
    $region28: #{tpu_custom_call.1} parent=1 // pred_region
      %2269 = vsyncadd [#allocation4], 0
      %s2270 = sshll.u32 [#allocation8], 4
      %s2271 = int_to_ptr.vmem [resolvable:$true] %s2270
      %s2272 = sshll.u32 %s3, 4
      %s2273 = int_to_ptr.hbm [resolvable:$true] %s2272
      %2278 = dma.vmem_to_hbm [thread:$0]  %s2271, 384, %s2273, [#allocation4], 128, 128, 8
    $region29: #{tpu_custom_call.1} parent=1 // pred_fallthru
      _
    // Predicated region
    $region30: #{tpu_custom_call.1} parent=1 // pred_check
      _
    $region31: #{tpu_custom_call.1} parent=1 // pred_check_branch
      %2280 = sbr.rel (0) target = $region33
    $region32: #{tpu_custom_call.1} parent=1 // pred_region
      %2282 = dma.done [#allocation4], 384
    $region33: #{tpu_custom_call.1} parent=1 // pred_fallthru
      _
    %2283 = vsyncpa [#allocation3], 1
    %2284 = vsyncpa [#allocation6], 1
    %2285 = vsyncpa [#allocation4], 1

</llo_original>
